<compile_context>
chip_gen: v7x
topology: tpu7x:2x2x1
jax: 0.10.0
libtpu: 0.0.40
codegen_flags: <defaults>
</compile_context>

<pallas_src>
import functools

import jax
import jax.numpy as jnp
from jax import lax
from jax.experimental import pallas as pl
from jax.experimental.pallas import tpu as pltpu


def conv2d_mxu_kernel(x_ref, w_ref, b_ref, o_ref, *, c_in, kh, kw, img_w):
    # x_ref: (C_in, n_cols + tap_pad)  flattened (N,H,W) pixel axis, zero padded
    # w_ref: (C_out, KH*KW*C_in)       tap-major packed weights (single tile)
    # b_ref: (C_out, 1)
    # o_ref: (C_out, n_cols)           lane-dense flattened output
    n_cols = o_ref.shape[1]

    x_full = x_ref[...]                    # (C_in, n_cols + tap_pad), ~7 KB
    w_full = w_ref[...]                    # (C_out, KH*KW*C_in), one vreg tile

    acc = jnp.zeros(o_ref.shape, jnp.float32)
    tap = 0
    for dy in range(kh):                   # 3x3 taps, unrolled at trace time
        for dx in range(kw):
            off = dy * img_w + dx                              # static offset
            patch = x_full[:, off:off + n_cols]                # (C_in, n_cols)
            wk = w_full[:, tap * c_in:(tap + 1) * c_in]        # (C_out, C_in)
            # MXU contraction over C_in, f32 accumulate.
            acc = acc + jnp.dot(wk, patch,
                                preferred_element_type=jnp.float32)
            tap += 1

    # Bias is a (C_out, 1) column -> free VPU broadcast-add along lanes.
    o_ref[...] = (acc + b_ref[...]).astype(o_ref.dtype)


def conv2d_pallas(x, w, b):
    """x: (N, C_in, H, W) f32; w: (C_out, C_in, KH, KW) f32; b: (C_out,) f32."""
    N, c_in, H, W = x.shape
    c_out, _, KH, KW = w.shape
    OH, OW = H - KH + 1, W - KW + 1        # stride=1, padding=0 ("VALID")

    # Flattened output-pixel axis spans the full HxW grid of every image
    # (garbage border columns cropped below), rounded up to a lane multiple.
    n_pix = N * H * W
    n_cols = ((n_pix + 127) // 128) * 128
    tap_pad = (KH - 1) * W + (KW - 1)      # max lane shift used by any tap

    # --- layout plumbing (wrapper side) ---
    x_flat = jnp.transpose(x, (1, 0, 2, 3)).reshape(c_in, n_pix)
    x_flat = jnp.pad(x_flat, ((0, 0), (0, n_cols + tap_pad - n_pix)))
    # (C_out, KH, KW, C_in) -> (C_out, KH*KW*C_in): tap-major, channel-minor.
    w_pack = jnp.transpose(w, (0, 2, 3, 1)).reshape(c_out, KH * KW * c_in)
    b_col = b.reshape(c_out, 1)

    flops = 2 * N * OH * OW * c_out * c_in * KH * KW
    bytes_accessed = 4 * (x.size + w.size + b.size + N * c_out * OH * OW)

    out_flat = pl.pallas_call(
        functools.partial(conv2d_mxu_kernel,
                          c_in=c_in, kh=KH, kw=KW, img_w=W),
        out_shape=jax.ShapeDtypeStruct((c_out, n_cols), x.dtype),
        grid_spec=pltpu.PrefetchScalarGridSpec(
            num_scalar_prefetch=0,
            grid=(1,),                              # whole batch in one step
            in_specs=[
                pl.BlockSpec((c_in, n_cols + tap_pad), lambda i: (0, 0)),
                pl.BlockSpec((c_out, KH * KW * c_in), lambda i: (0, 0)),
                pl.BlockSpec((c_out, 1), lambda i: (0, 0)),
            ],
            out_specs=pl.BlockSpec((c_out, n_cols), lambda i: (0, 0)),
        ),
        compiler_params=pltpu.CompilerParams(
            dimension_semantics=("parallel",),
        ),
        cost_estimate=pl.CostEstimate(
            flops=flops, transcendentals=0, bytes_accessed=bytes_accessed),
    )(x_flat, w_pack, b_col)

    # Crop the padded pixel grid back to valid conv outputs and restore NCHW.
    out = out_flat[:, :n_pix].reshape(c_out, N, H, W)[:, :, :OH, :OW]
    return jnp.transpose(out, (1, 0, 2, 3))


if __name__ == "__main__":
    key = jax.random.PRNGKey(0)
    k_x, k_w, k_b = jax.random.split(key, 3)

    # Shapes implied by the module: Conv2d(3 -> 6, k=3, s=1, p=0).
    N, C_IN, H, W = 2, 3, 16, 16
    C_OUT, KH, KW = 6, 3, 3

    x = jax.random.normal(k_x, (N, C_IN, H, W), dtype=jnp.float32)

    # Deterministic parameter init (PyTorch-default-style uniform bounds).
    fan_in = C_IN * KH * KW
    bound = 1.0 / (fan_in ** 0.5)
    w = jax.random.uniform(k_w, (C_OUT, C_IN, KH, KW), jnp.float32, -bound, bound)
    b = jax.random.uniform(k_b, (C_OUT,), jnp.float32, -bound, bound)

    out = conv2d_pallas(x, w, b)
    out = jax.block_until_ready(out)

    # Reference check against XLA's conv.
    ref = lax.conv_general_dilated(
        x, w, window_strides=(1, 1), padding="VALID",
        dimension_numbers=("NCHW", "OIHW", "NCHW"),
        precision=lax.Precision.HIGHEST,
    ) + b[None, :, None, None]

    assert out.shape == (N, C_OUT, H - KH + 1, W - KW + 1), out.shape
    # Tolerance accommodates MXU matmul precision vs the f32 reference.
    assert jnp.allclose(out, ref, atol=2e-3, rtol=2e-3), \
        float(jnp.max(jnp.abs(out - ref)))
    print("KERNEL_OK")
</pallas_src>

<mosaic_0001>
module attributes {stable_mosaic.version = 11 : i64} {
  func.func @conv2d_mxu_kernel(%arg0: i32, %arg1: memref<3x546xf32, #tpu.memory_space<vmem>>, %arg2: memref<6x27xf32, #tpu.memory_space<vmem>>, %arg3: memref<6x1xf32, #tpu.memory_space<vmem>>, %arg4: memref<6x512xf32, #tpu.memory_space<vmem>>) attributes {dimension_semantics = [#tpu.dimension_semantics<parallel>], iteration_bounds = array<i64: 1>, scalar_prefetch = 0 : i64, scratch_operands = 0 : i64, tpu.core_type = #tpu.core_type<tc>, window_params = [{pipeline_mode = #tpu.pipeline_mode<synchronous>, transform_indices = @transform_0, window_bounds = array<i64: 3, 546>}, {pipeline_mode = #tpu.pipeline_mode<synchronous>, transform_indices = @transform_1, window_bounds = array<i64: 6, 27>}, {pipeline_mode = #tpu.pipeline_mode<synchronous>, transform_indices = @transform_2, window_bounds = array<i64: 6, 1>}, {pipeline_mode = #tpu.pipeline_mode<synchronous>, transform_indices = @transform_3, window_bounds = array<i64: 6, 512>}]} {
    %c0 = arith.constant 0 : index
    %c0_0 = arith.constant 0 : index
    %0 = vector.load %arg1[%c0, %c0_0] : memref<3x546xf32, #tpu.memory_space<vmem>>, vector<3x546xf32>
    %c0_1 = arith.constant 0 : index
    %c0_2 = arith.constant 0 : index
    %1 = vector.load %arg2[%c0_1, %c0_2] : memref<6x27xf32, #tpu.memory_space<vmem>>, vector<6x27xf32>
    %cst = arith.constant 0.000000e+00 : f32
    %2 = vector.broadcast %cst : f32 to vector<6x512xf32>
    %3 = vector.extract_strided_slice %0 {offsets = [0, 0], sizes = [3, 512], strides = [1, 1]} : vector<3x546xf32> to vector<3x512xf32>
    %4 = vector.extract_strided_slice %1 {offsets = [0, 0], sizes = [6, 3], strides = [1, 1]} : vector<6x27xf32> to vector<6x3xf32>
    %cst_3 = arith.constant dense<0.000000e+00> : vector<6x512xf32>
    %5 = tpu.matmul %4, %3, %cst_3 {dimension_numbers = #tpu.dot_dimension_numbers<[1], [0], [0], [1], [0, 0, 1, 1], [], []>} : vector<6x3xf32>, vector<3x512xf32>, vector<6x512xf32> -> vector<6x512xf32>
    %6 = arith.addf %2, %5 : vector<6x512xf32>
    %7 = vector.extract_strided_slice %0 {offsets = [0, 1], sizes = [3, 512], strides = [1, 1]} : vector<3x546xf32> to vector<3x512xf32>
    %8 = vector.extract_strided_slice %1 {offsets = [0, 3], sizes = [6, 3], strides = [1, 1]} : vector<6x27xf32> to vector<6x3xf32>
    %cst_4 = arith.constant dense<0.000000e+00> : vector<6x512xf32>
    %9 = tpu.matmul %8, %7, %cst_4 {dimension_numbers = #tpu.dot_dimension_numbers<[1], [0], [0], [1], [0, 0, 1, 1], [], []>} : vector<6x3xf32>, vector<3x512xf32>, vector<6x512xf32> -> vector<6x512xf32>
    %10 = arith.addf %6, %9 : vector<6x512xf32>
    %11 = vector.extract_strided_slice %0 {offsets = [0, 2], sizes = [3, 512], strides = [1, 1]} : vector<3x546xf32> to vector<3x512xf32>
    %12 = vector.extract_strided_slice %1 {offsets = [0, 6], sizes = [6, 3], strides = [1, 1]} : vector<6x27xf32> to vector<6x3xf32>
    %cst_5 = arith.constant dense<0.000000e+00> : vector<6x512xf32>
    %13 = tpu.matmul %12, %11, %cst_5 {dimension_numbers = #tpu.dot_dimension_numbers<[1], [0], [0], [1], [0, 0, 1, 1], [], []>} : vector<6x3xf32>, vector<3x512xf32>, vector<6x512xf32> -> vector<6x512xf32>
    %14 = arith.addf %10, %13 : vector<6x512xf32>
    %15 = vector.extract_strided_slice %0 {offsets = [0, 16], sizes = [3, 512], strides = [1, 1]} : vector<3x546xf32> to vector<3x512xf32>
    %16 = vector.extract_strided_slice %1 {offsets = [0, 9], sizes = [6, 3], strides = [1, 1]} : vector<6x27xf32> to vector<6x3xf32>
    %cst_6 = arith.constant dense<0.000000e+00> : vector<6x512xf32>
    %17 = tpu.matmul %16, %15, %cst_6 {dimension_numbers = #tpu.dot_dimension_numbers<[1], [0], [0], [1], [0, 0, 1, 1], [], []>} : vector<6x3xf32>, vector<3x512xf32>, vector<6x512xf32> -> vector<6x512xf32>
    %18 = arith.addf %14, %17 : vector<6x512xf32>
    %19 = vector.extract_strided_slice %0 {offsets = [0, 17], sizes = [3, 512], strides = [1, 1]} : vector<3x546xf32> to vector<3x512xf32>
    %20 = vector.extract_strided_slice %1 {offsets = [0, 12], sizes = [6, 3], strides = [1, 1]} : vector<6x27xf32> to vector<6x3xf32>
    %cst_7 = arith.constant dense<0.000000e+00> : vector<6x512xf32>
    %21 = tpu.matmul %20, %19, %cst_7 {dimension_numbers = #tpu.dot_dimension_numbers<[1], [0], [0], [1], [0, 0, 1, 1], [], []>} : vector<6x3xf32>, vector<3x512xf32>, vector<6x512xf32> -> vector<6x512xf32>
    %22 = arith.addf %18, %21 : vector<6x512xf32>
    %23 = vector.extract_strided_slice %0 {offsets = [0, 18], sizes = [3, 512], strides = [1, 1]} : vector<3x546xf32> to vector<3x512xf32>
    %24 = vector.extract_strided_slice %1 {offsets = [0, 15], sizes = [6, 3], strides = [1, 1]} : vector<6x27xf32> to vector<6x3xf32>
    %cst_8 = arith.constant dense<0.000000e+00> : vector<6x512xf32>
    %25 = tpu.matmul %24, %23, %cst_8 {dimension_numbers = #tpu.dot_dimension_numbers<[1], [0], [0], [1], [0, 0, 1, 1], [], []>} : vector<6x3xf32>, vector<3x512xf32>, vector<6x512xf32> -> vector<6x512xf32>
    %26 = arith.addf %22, %25 : vector<6x512xf32>
    %27 = vector.extract_strided_slice %0 {offsets = [0, 32], sizes = [3, 512], strides = [1, 1]} : vector<3x546xf32> to vector<3x512xf32>
    %28 = vector.extract_strided_slice %1 {offsets = [0, 18], sizes = [6, 3], strides = [1, 1]} : vector<6x27xf32> to vector<6x3xf32>
    %cst_9 = arith.constant dense<0.000000e+00> : vector<6x512xf32>
    %29 = tpu.matmul %28, %27, %cst_9 {dimension_numbers = #tpu.dot_dimension_numbers<[1], [0], [0], [1], [0, 0, 1, 1], [], []>} : vector<6x3xf32>, vector<3x512xf32>, vector<6x512xf32> -> vector<6x512xf32>
    %30 = arith.addf %26, %29 : vector<6x512xf32>
    %31 = vector.extract_strided_slice %0 {offsets = [0, 33], sizes = [3, 512], strides = [1, 1]} : vector<3x546xf32> to vector<3x512xf32>
    %32 = vector.extract_strided_slice %1 {offsets = [0, 21], sizes = [6, 3], strides = [1, 1]} : vector<6x27xf32> to vector<6x3xf32>
    %cst_10 = arith.constant dense<0.000000e+00> : vector<6x512xf32>
    %33 = tpu.matmul %32, %31, %cst_10 {dimension_numbers = #tpu.dot_dimension_numbers<[1], [0], [0], [1], [0, 0, 1, 1], [], []>} : vector<6x3xf32>, vector<3x512xf32>, vector<6x512xf32> -> vector<6x512xf32>
    %34 = arith.addf %30, %33 : vector<6x512xf32>
    %35 = vector.extract_strided_slice %0 {offsets = [0, 34], sizes = [3, 512], strides = [1, 1]} : vector<3x546xf32> to vector<3x512xf32>
    %36 = vector.extract_strided_slice %1 {offsets = [0, 24], sizes = [6, 3], strides = [1, 1]} : vector<6x27xf32> to vector<6x3xf32>
    %cst_11 = arith.constant dense<0.000000e+00> : vector<6x512xf32>
    %37 = tpu.matmul %36, %35, %cst_11 {dimension_numbers = #tpu.dot_dimension_numbers<[1], [0], [0], [1], [0, 0, 1, 1], [], []>} : vector<6x3xf32>, vector<3x512xf32>, vector<6x512xf32> -> vector<6x512xf32>
    %38 = arith.addf %34, %37 : vector<6x512xf32>
    %c0_12 = arith.constant 0 : index
    %c0_13 = arith.constant 0 : index
    %39 = vector.load %arg3[%c0_12, %c0_13] : memref<6x1xf32, #tpu.memory_space<vmem>>, vector<6x1xf32>
    %40 = vector.broadcast %39 : vector<6x1xf32> to vector<6x512xf32>
    %41 = arith.addf %38, %40 : vector<6x512xf32>
    %c0_14 = arith.constant 0 : index
    %c0_15 = arith.constant 0 : index
    %42 = vector.load %arg4[%c0_14, %c0_15] : memref<6x512xf32, #tpu.memory_space<vmem>>, vector<6x512xf32>
    tpu.vector_store %arg4[%c0_14, %c0_15], %41 {strides = array<i32>} : memref<6x512xf32, #tpu.memory_space<vmem>>, vector<6x512xf32>,
    return
  }
  func.func @transform_0(%arg0: i32) -> (i32, i32) {
    %c0_i32 = arith.constant 0 : i32
    %c0_i32_0 = arith.constant 0 : i32
    %c0_i32_1 = arith.constant 0 : i32
    return %c0_i32, %c0_i32_0 : i32, i32
  }
  func.func @transform_1(%arg0: i32) -> (i32, i32) {
    %c0_i32 = arith.constant 0 : i32
    %c0_i32_0 = arith.constant 0 : i32
    %c0_i32_1 = arith.constant 0 : i32
    return %c0_i32, %c0_i32_0 : i32, i32
  }
  func.func @transform_2(%arg0: i32) -> (i32, i32) {
    %c0_i32 = arith.constant 0 : i32
    %c0_i32_0 = arith.constant 0 : i32
    %c0_i32_1 = arith.constant 0 : i32
    return %c0_i32, %c0_i32_0 : i32, i32
  }
  func.func @transform_3(%arg0: i32) -> (i32, i32) {
    %c0_i32 = arith.constant 0 : i32
    %c0_i32_0 = arith.constant 0 : i32
    %c0_i32_1 = arith.constant 0 : i32
    return %c0_i32, %c0_i32_0 : i32, i32
  }
}

</mosaic_0001>

<llo_original>
// kernel: tpu_custom_call.1
$region0: #{tpu_custom_call.1}
  #allocation0 [shape = 'u32[]', space=smem, size = 0x4, offset = 0x4, fixed_abs, tag = 'smem constant byte address 0x4 - core index']
  #allocation1 [shape = 'u32[144,128]{1,0:T(1,128)}', space=vmem, size = 0x12000, scoped, tag = 'internal scratch']
  %s0 = inlined_call_operand.hbm [shape: f32[3,546], index: 0, kind: input, shape index: {}]
  %s1 = inlined_call_operand.vmem [shape: f32[6,27], index: 1, kind: input, shape index: {}]
  %s2 = inlined_call_operand.vmem [shape: f32[6,1], index: 2, kind: input, shape index: {}]
  %s3 = inlined_call_operand.hbm [shape: f32[6,512], index: 3, kind: output, shape index: {}]
  %s4 = sld [smem:[#allocation0]]
  $region26: #{tpu_custom_call.1} parent=0
    _
  %s6 = ssub.s32 1, %s4
  %s7 = scalar_select 0, %s6, %s4
  $region1: #{tpu_custom_call.1} parent=0
    #allocation2 [shape = 'u8[10240]{0}', space=vmem, size = 0x2800, scoped, tag = 'input window, operand 0, single buffered']
    #allocation3 [shape = 's32[1]{0}', space=sflag, size = 0x4, scoped, tag = 'scoped memory for tpu_custom_call.1']
    #allocation4 [shape = 's32[1]{0}', space=sflag, size = 0x4, scoped, tag = 'scoped memory for tpu_custom_call.1']
    #allocation5 [shape = 'u8[16384]{0}', space=vmem, size = 0x4000, scoped, tag = 'output window, operand 0, single buffered']
    %8 = vsyncpa [#allocation3], 0
    %9 = vsyncpa [#allocation4], 0
    // Predicated region
    $region2: #{tpu_custom_call.1} parent=1 // pred_check
      _
    $region3: #{tpu_custom_call.1} parent=1 // pred_check_branch
      %11 = sbr.rel (0) target = $region5
    $region4: #{tpu_custom_call.1} parent=1 // pred_region
      %s13 = ssub.s32 320, 320
      %14 = vsyncadd [#allocation3], %s13
      %s16 = sshll.u32 [#allocation2], 4
      %s17 = int_to_ptr.vmem [resolvable:$true] %s16
      %19 = dma.hbm_to_vmem [thread:$0]  %s0, 320, %s17, [#allocation3]
    $region5: #{tpu_custom_call.1} parent=1 // pred_fallthru
      _
    // Predicated region
    $region6: #{tpu_custom_call.1} parent=1 // pred_check
      _
    $region7: #{tpu_custom_call.1} parent=1 // pred_check_branch
      %21 = sbr.rel (0) target = $region9
    $region8: #{tpu_custom_call.1} parent=1 // pred_region
      _
    $region9: #{tpu_custom_call.1} parent=1 // pred_fallthru
      _
    // Predicated region
    $region10: #{tpu_custom_call.1} parent=1 // pred_check
      _
    $region11: #{tpu_custom_call.1} parent=1 // pred_check_branch
      %23 = sbr.rel (0) target = $region13
    $region12: #{tpu_custom_call.1} parent=1 // pred_region
      _
    $region13: #{tpu_custom_call.1} parent=1 // pred_fallthru
      _
    // Predicated region
    $region14: #{tpu_custom_call.1} parent=1 // pred_check
      _
    $region15: #{tpu_custom_call.1} parent=1 // pred_check_branch
      %25 = sbr.rel (0) target = $region17
    $region16: #{tpu_custom_call.1} parent=1 // pred_region
      %26 = dma.done [#allocation3], 320
    $region17: #{tpu_custom_call.1} parent=1 // pred_fallthru
      _
    %v27 = vld [vmem:[#allocation2] sm:$0x77]
    %v28 = vld [vmem:[#allocation2 + $0x8] sm:$0x77]
    %v29 = vld [vmem:[#allocation2 + $0x10] sm:$0x7]
    %v30 = vld [vmem:[%s1] sm:$0x3f]
    %32 = vrot.lane.b32.xlu0 %v30, 125
    %v33 = vpop.permute.xlu0 %32
    %v37 = vcombine.high %v27, %v27
    %v38 = vcombine.high %v28, %v28
    %39 = vrot.lane.b32.xlu0 %v27, 127
    %v40 = vpop.permute.xlu0 %39
    %41 = vrot.lane.b32.xlu0 %v37, 127
    %v42 = vpop.permute.xlu0 %41
    %43 = vrot.lane.b32.xlu0 %v28, 127
    %v44 = vpop.permute.xlu0 %43
    %45 = vrot.lane.b32.xlu0 %v38, 127
    %v46 = vpop.permute.xlu0 %45
    %47 = vrot.lane.b32.xlu0 %v29, 127
    %v48 = vpop.permute.xlu0 %47
    %vm49 = vcmask 1039360
    %v50 = vsel %vm49, %v40, %v42
    %v51 = vsel %vm49, %v42, %v44
    %v52 = vsel %vm49, %v44, %v46
    %v53 = vsel %vm49, %v46, %v48
    %vm54 = vcmask 23552
    %v55 = vsel %vm54, %v33, 0
    %vm57 = vcmask 1042432
    %v58 = vsel %vm57, %v50, 0
    %v60 = vsel %vm57, %v51, 0
    %v62 = vsel %vm57, %v52, 0
    %v64 = vsel %vm57, %v53, 0
    %66 = vmatprep.subr.mxu0 %v60
    %67 = vmatpush1.msra.mxu0 %v58
    %68 = vmatprep.subr.mxu0 0.0
    %69 = vmatpush1.msra.mxu0 0.0
    %70 = vmatprep.subr.mxu0 0.0
    %71 = vmatpush1.msra.mxu0 0.0
    %72 = vmatprep.subr.mxu0 0.0
    %73 = vmatpush1.msra.mxu0 0.0
    %74 = vmatprep.subr.mxu0 0.0
    %75 = vmatpush1.msra.mxu0 0.0
    %76 = vmatprep.subr.mxu0 0.0
    %77 = vmatpush1.msra.mxu0 0.0
    %78 = vmatprep.subr.mxu0 0.0
    %79 = vmatpush1.msra.mxu0 0.0
    %80 = vmatprep.subr.mxu0 0.0
    %81 = vmatpush1.msra.mxu0 0.0
    %82 = vmatprep.subr.mxu0 0.0
    %83 = vmatpush1.msra.mxu0 0.0
    %84 = vmatprep.subr.mxu0 0.0
    %85 = vmatpush1.msra.mxu0 0.0
    %86 = vmatprep.subr.mxu0 0.0
    %87 = vmatpush1.msra.mxu0 0.0
    %88 = vmatprep.subr.mxu0 0.0
    %89 = vmatpush1.msra.mxu0 0.0
    %90 = vmatprep.subr.mxu0 0.0
    %91 = vmatpush1.msra.mxu0 0.0
    %92 = vmatprep.subr.mxu0 0.0
    %93 = vmatpush1.msra.mxu0 0.0
    %94 = vmatprep.subr.mxu0 0.0
    %95 = vmatpush1.msra.mxu0 0.0
    %96 = vmatprep.subr.mxu0 0.0
    %97 = vmatpush1.msra.mxu0 0.0
    %98 = vmatprep.subr.mxu0 0.0
    %99 = vmatpush1.msra.mxu0 0.0
    %100 = vmatprep.subr.mxu0 0.0
    %101 = vmatpush1.msra.mxu0 0.0
    %102 = vmatprep.subr.mxu0 0.0
    %103 = vmatpush1.msra.mxu0 0.0
    %104 = vmatprep.subr.mxu0 0.0
    %105 = vmatpush1.msra.mxu0 0.0
    %106 = vmatprep.subr.mxu0 0.0
    %107 = vmatpush1.msra.mxu0 0.0
    %108 = vmatprep.subr.mxu0 0.0
    %109 = vmatpush1.msra.mxu0 0.0
    %110 = vmatprep.subr.mxu0 0.0
    %111 = vmatpush1.msra.mxu0 0.0
    %112 = vmatprep.subr.mxu0 0.0
    %113 = vmatpush1.msra.mxu0 0.0
    %114 = vmatprep.subr.mxu0 0.0
    %115 = vmatpush1.msra.mxu0 0.0
    %116 = vmatprep.subr.mxu0 0.0
    %117 = vmatpush1.msra.mxu0 0.0
    %118 = vmatprep.subr.mxu0 0.0
    %119 = vmatpush1.msra.mxu0 0.0
    %120 = vmatprep.subr.mxu0 0.0
    %121 = vmatpush1.msra.mxu0 0.0
    %122 = vmatprep.subr.mxu0 0.0
    %123 = vmatpush1.msra.mxu0 0.0
    %124 = vmatprep.subr.mxu0 0.0
    %125 = vmatpush1.msra.mxu0 0.0
    %126 = vmatprep.subr.mxu0 0.0
    %127 = vmatpush1.msra.mxu0 0.0
    %128 = vmatprep.subr.mxu0 0.0
    %129 = vmatpush1.msra.mxu0 0.0
    %130 = vmatprep.mubr.f32.mxu0 0.0
    %131 = vmatmul.mubr.f32.gmra.mrb[0].mxu0 %v55
    %v132 = vpop.f32.mrb[0].mxu0
    %v133 = vadd.f32 0.0, %v132
    %v134 = vpop.f32.mrb[0].mxu0
    %v135 = vadd.f32 0.0, %v134
    %136 = vdwg.mxu0
    %137 = vmatprep.subr.mxu0 %v64
    %138 = vmatpush1.msra.mxu0 %v62
    %139 = vmatprep.subr.mxu0 0.0
    %140 = vmatpush1.msra.mxu0 0.0
    %141 = vmatprep.subr.mxu0 0.0
    %142 = vmatpush1.msra.mxu0 0.0
    %143 = vmatprep.subr.mxu0 0.0
    %144 = vmatpush1.msra.mxu0 0.0
    %145 = vmatprep.subr.mxu0 0.0
    %146 = vmatpush1.msra.mxu0 0.0
    %147 = vmatprep.subr.mxu0 0.0
    %148 = vmatpush1.msra.mxu0 0.0
    %149 = vmatprep.subr.mxu0 0.0
    %150 = vmatpush1.msra.mxu0 0.0
    %151 = vmatprep.subr.mxu0 0.0
    %152 = vmatpush1.msra.mxu0 0.0
    %153 = vmatprep.subr.mxu0 0.0
    %154 = vmatpush1.msra.mxu0 0.0
    %155 = vmatprep.subr.mxu0 0.0
    %156 = vmatpush1.msra.mxu0 0.0
    %157 = vmatprep.subr.mxu0 0.0
    %158 = vmatpush1.msra.mxu0 0.0
    %159 = vmatprep.subr.mxu0 0.0
    %160 = vmatpush1.msra.mxu0 0.0
    %161 = vmatprep.subr.mxu0 0.0
    %162 = vmatpush1.msra.mxu0 0.0
    %163 = vmatprep.subr.mxu0 0.0
    %164 = vmatpush1.msra.mxu0 0.0
    %165 = vmatprep.subr.mxu0 0.0
    %166 = vmatpush1.msra.mxu0 0.0
    %167 = vmatprep.subr.mxu0 0.0
    %168 = vmatpush1.msra.mxu0 0.0
    %169 = vmatprep.subr.mxu0 0.0
    %170 = vmatpush1.msra.mxu0 0.0
    %171 = vmatprep.subr.mxu0 0.0
    %172 = vmatpush1.msra.mxu0 0.0
    %173 = vmatprep.subr.mxu0 0.0
    %174 = vmatpush1.msra.mxu0 0.0
    %175 = vmatprep.subr.mxu0 0.0
    %176 = vmatpush1.msra.mxu0 0.0
    %177 = vmatprep.subr.mxu0 0.0
    %178 = vmatpush1.msra.mxu0 0.0
    %179 = vmatprep.subr.mxu0 0.0
    %180 = vmatpush1.msra.mxu0 0.0
    %181 = vmatprep.subr.mxu0 0.0
    %182 = vmatpush1.msra.mxu0 0.0
    %183 = vmatprep.subr.mxu0 0.0
    %184 = vmatpush1.msra.mxu0 0.0
    %185 = vmatprep.subr.mxu0 0.0
    %186 = vmatpush1.msra.mxu0 0.0
    %187 = vmatprep.subr.mxu0 0.0
    %188 = vmatpush1.msra.mxu0 0.0
    %189 = vmatprep.subr.mxu0 0.0
    %190 = vmatpush1.msra.mxu0 0.0
    %191 = vmatprep.subr.mxu0 0.0
    %192 = vmatpush1.msra.mxu0 0.0
    %193 = vmatprep.subr.mxu0 0.0
    %194 = vmatpush1.msra.mxu0 0.0
    %195 = vmatprep.subr.mxu0 0.0
    %196 = vmatpush1.msra.mxu0 0.0
    %197 = vmatprep.subr.mxu0 0.0
    %198 = vmatpush1.msra.mxu0 0.0
    %199 = vmatprep.subr.mxu0 0.0
    %200 = vmatpush1.msra.mxu0 0.0
    %201 = vmatprep.mubr.f32.mxu0 0.0
    %202 = vmatmul.mubr.f32.gmra.mrb[0].mxu0 %v55
    %v203 = vpop.f32.mrb[0].mxu0
    %v204 = vadd.f32 0.0, %v203
    %v205 = vpop.f32.mrb[0].mxu0
    %v206 = vadd.f32 0.0, %v205
    %207 = vdwg.mxu0
    %v208 = vsel %vm54, %v30, 0
    %v210 = vsel %vm57, %v27, 0
    %v212 = vsel %vm57, %v37, 0
    %v214 = vsel %vm57, %v28, 0
    %v216 = vsel %vm57, %v38, 0
    %218 = vmatprep.subr.mxu0 %v212
    %219 = vmatpush1.msra.mxu0 %v210
    %220 = vmatprep.subr.mxu0 0.0
    %221 = vmatpush1.msra.mxu0 0.0
    %222 = vmatprep.subr.mxu0 0.0
    %223 = vmatpush1.msra.mxu0 0.0
    %224 = vmatprep.subr.mxu0 0.0
    %225 = vmatpush1.msra.mxu0 0.0
    %226 = vmatprep.subr.mxu0 0.0
    %227 = vmatpush1.msra.mxu0 0.0
    %228 = vmatprep.subr.mxu0 0.0
    %229 = vmatpush1.msra.mxu0 0.0
    %230 = vmatprep.subr.mxu0 0.0
    %231 = vmatpush1.msra.mxu0 0.0
    %232 = vmatprep.subr.mxu0 0.0
    %233 = vmatpush1.msra.mxu0 0.0
    %234 = vmatprep.subr.mxu0 0.0
    %235 = vmatpush1.msra.mxu0 0.0
    %236 = vmatprep.subr.mxu0 0.0
    %237 = vmatpush1.msra.mxu0 0.0
    %238 = vmatprep.subr.mxu0 0.0
    %239 = vmatpush1.msra.mxu0 0.0
    %240 = vmatprep.subr.mxu0 0.0
    %241 = vmatpush1.msra.mxu0 0.0
    %242 = vmatprep.subr.mxu0 0.0
    %243 = vmatpush1.msra.mxu0 0.0
    %244 = vmatprep.subr.mxu0 0.0
    %245 = vmatpush1.msra.mxu0 0.0
    %246 = vmatprep.subr.mxu0 0.0
    %247 = vmatpush1.msra.mxu0 0.0
    %248 = vmatprep.subr.mxu0 0.0
    %249 = vmatpush1.msra.mxu0 0.0
    %250 = vmatprep.subr.mxu0 0.0
    %251 = vmatpush1.msra.mxu0 0.0
    %252 = vmatprep.subr.mxu0 0.0
    %253 = vmatpush1.msra.mxu0 0.0
    %254 = vmatprep.subr.mxu0 0.0
    %255 = vmatpush1.msra.mxu0 0.0
    %256 = vmatprep.subr.mxu0 0.0
    %257 = vmatpush1.msra.mxu0 0.0
    %258 = vmatprep.subr.mxu0 0.0
    %259 = vmatpush1.msra.mxu0 0.0
    %260 = vmatprep.subr.mxu0 0.0
    %261 = vmatpush1.msra.mxu0 0.0
    %262 = vmatprep.subr.mxu0 0.0
    %263 = vmatpush1.msra.mxu0 0.0
    %264 = vmatprep.subr.mxu0 0.0
    %265 = vmatpush1.msra.mxu0 0.0
    %266 = vmatprep.subr.mxu0 0.0
    %267 = vmatpush1.msra.mxu0 0.0
    %268 = vmatprep.subr.mxu0 0.0
    %269 = vmatpush1.msra.mxu0 0.0
    %270 = vmatprep.subr.mxu0 0.0
    %271 = vmatpush1.msra.mxu0 0.0
    %272 = vmatprep.subr.mxu0 0.0
    %273 = vmatpush1.msra.mxu0 0.0
    %274 = vmatprep.subr.mxu0 0.0
    %275 = vmatpush1.msra.mxu0 0.0
    %276 = vmatprep.subr.mxu0 0.0
    %277 = vmatpush1.msra.mxu0 0.0
    %278 = vmatprep.subr.mxu0 0.0
    %279 = vmatpush1.msra.mxu0 0.0
    %280 = vmatprep.subr.mxu0 0.0
    %281 = vmatpush1.msra.mxu0 0.0
    %282 = vmatprep.mubr.f32.mxu0 0.0
    %283 = vmatmul.mubr.f32.gmra.mrb[0].mxu0 %v208
    %v284 = vpop.f32.mrb[0].mxu0
    %v285 = vadd.f32 %v133, %v284
    %v286 = vpop.f32.mrb[0].mxu0
    %v287 = vadd.f32 %v135, %v286
    %288 = vdwg.mxu0
    %289 = vmatprep.subr.mxu0 %v216
    %290 = vmatpush1.msra.mxu0 %v214
    %291 = vmatprep.subr.mxu0 0.0
    %292 = vmatpush1.msra.mxu0 0.0
    %293 = vmatprep.subr.mxu0 0.0
    %294 = vmatpush1.msra.mxu0 0.0
    %295 = vmatprep.subr.mxu0 0.0
    %296 = vmatpush1.msra.mxu0 0.0
    %297 = vmatprep.subr.mxu0 0.0
    %298 = vmatpush1.msra.mxu0 0.0
    %299 = vmatprep.subr.mxu0 0.0
    %300 = vmatpush1.msra.mxu0 0.0
    %301 = vmatprep.subr.mxu0 0.0
    %302 = vmatpush1.msra.mxu0 0.0
    %303 = vmatprep.subr.mxu0 0.0
    %304 = vmatpush1.msra.mxu0 0.0
    %305 = vmatprep.subr.mxu0 0.0
    %306 = vmatpush1.msra.mxu0 0.0
    %307 = vmatprep.subr.mxu0 0.0
    %308 = vmatpush1.msra.mxu0 0.0
    %309 = vmatprep.subr.mxu0 0.0
    %310 = vmatpush1.msra.mxu0 0.0
    %311 = vmatprep.subr.mxu0 0.0
    %312 = vmatpush1.msra.mxu0 0.0
    %313 = vmatprep.subr.mxu0 0.0
    %314 = vmatpush1.msra.mxu0 0.0
    %315 = vmatprep.subr.mxu0 0.0
    %316 = vmatpush1.msra.mxu0 0.0
    %317 = vmatprep.subr.mxu0 0.0
    %318 = vmatpush1.msra.mxu0 0.0
    %319 = vmatprep.subr.mxu0 0.0
    %320 = vmatpush1.msra.mxu0 0.0
    %321 = vmatprep.subr.mxu0 0.0
    %322 = vmatpush1.msra.mxu0 0.0
    %323 = vmatprep.subr.mxu0 0.0
    %324 = vmatpush1.msra.mxu0 0.0
    %325 = vmatprep.subr.mxu0 0.0
    %326 = vmatpush1.msra.mxu0 0.0
    %327 = vmatprep.subr.mxu0 0.0
    %328 = vmatpush1.msra.mxu0 0.0
    %329 = vmatprep.subr.mxu0 0.0
    %330 = vmatpush1.msra.mxu0 0.0
    %331 = vmatprep.subr.mxu0 0.0
    %332 = vmatpush1.msra.mxu0 0.0
    %333 = vmatprep.subr.mxu0 0.0
    %334 = vmatpush1.msra.mxu0 0.0
    %335 = vmatprep.subr.mxu0 0.0
    %336 = vmatpush1.msra.mxu0 0.0
    %337 = vmatprep.subr.mxu0 0.0
    %338 = vmatpush1.msra.mxu0 0.0
    %339 = vmatprep.subr.mxu0 0.0
    %340 = vmatpush1.msra.mxu0 0.0
    %341 = vmatprep.subr.mxu0 0.0
    %342 = vmatpush1.msra.mxu0 0.0
    %343 = vmatprep.subr.mxu0 0.0
    %344 = vmatpush1.msra.mxu0 0.0
    %345 = vmatprep.subr.mxu0 0.0
    %346 = vmatpush1.msra.mxu0 0.0
    %347 = vmatprep.subr.mxu0 0.0
    %348 = vmatpush1.msra.mxu0 0.0
    %349 = vmatprep.subr.mxu0 0.0
    %350 = vmatpush1.msra.mxu0 0.0
    %351 = vmatprep.subr.mxu0 0.0
    %352 = vmatpush1.msra.mxu0 0.0
    %353 = vmatprep.mubr.f32.mxu0 0.0
    %354 = vmatmul.mubr.f32.gmra.mrb[0].mxu0 %v208
    %v355 = vpop.f32.mrb[0].mxu0
    %v356 = vadd.f32 %v204, %v355
    %v357 = vpop.f32.mrb[0].mxu0
    %v358 = vadd.f32 %v206, %v357
    %359 = vdwg.mxu0
    %360 = vrot.lane.b32.xlu0 %v30, 122
    %v361 = vpop.permute.xlu0 %360
    %362 = vrot.lane.b32.xlu0 %v27, 126
    %v363 = vpop.permute.xlu0 %362
    %364 = vrot.lane.b32.xlu0 %v37, 126
    %v365 = vpop.permute.xlu0 %364
    %366 = vrot.lane.b32.xlu0 %v28, 126
    %v367 = vpop.permute.xlu0 %366
    %368 = vrot.lane.b32.xlu0 %v38, 126
    %v369 = vpop.permute.xlu0 %368
    %370 = vrot.lane.b32.xlu0 %v29, 126
    %v371 = vpop.permute.xlu0 %370
    %vm372 = vcmask 1031168
    %v373 = vsel %vm372, %v363, %v365
    %v374 = vsel %vm372, %v365, %v367
    %v375 = vsel %vm372, %v367, %v369
    %v376 = vsel %vm372, %v369, %v371
    %v377 = vsel %vm54, %v361, 0
    %v379 = vsel %vm57, %v373, 0
    %v381 = vsel %vm57, %v374, 0
    %v383 = vsel %vm57, %v375, 0
    %v385 = vsel %vm57, %v376, 0
    %387 = vmatprep.subr.mxu0 %v381
    %388 = vmatpush1.msra.mxu0 %v379
    %389 = vmatprep.subr.mxu0 0.0
    %390 = vmatpush1.msra.mxu0 0.0
    %391 = vmatprep.subr.mxu0 0.0
    %392 = vmatpush1.msra.mxu0 0.0
    %393 = vmatprep.subr.mxu0 0.0
    %394 = vmatpush1.msra.mxu0 0.0
    %395 = vmatprep.subr.mxu0 0.0
    %396 = vmatpush1.msra.mxu0 0.0
    %397 = vmatprep.subr.mxu0 0.0
    %398 = vmatpush1.msra.mxu0 0.0
    %399 = vmatprep.subr.mxu0 0.0
    %400 = vmatpush1.msra.mxu0 0.0
    %401 = vmatprep.subr.mxu0 0.0
    %402 = vmatpush1.msra.mxu0 0.0
    %403 = vmatprep.subr.mxu0 0.0
    %404 = vmatpush1.msra.mxu0 0.0
    %405 = vmatprep.subr.mxu0 0.0
    %406 = vmatpush1.msra.mxu0 0.0
    %407 = vmatprep.subr.mxu0 0.0
    %408 = vmatpush1.msra.mxu0 0.0
    %409 = vmatprep.subr.mxu0 0.0
    %410 = vmatpush1.msra.mxu0 0.0
    %411 = vmatprep.subr.mxu0 0.0
    %412 = vmatpush1.msra.mxu0 0.0
    %413 = vmatprep.subr.mxu0 0.0
    %414 = vmatpush1.msra.mxu0 0.0
    %415 = vmatprep.subr.mxu0 0.0
    %416 = vmatpush1.msra.mxu0 0.0
    %417 = vmatprep.subr.mxu0 0.0
    %418 = vmatpush1.msra.mxu0 0.0
    %419 = vmatprep.subr.mxu0 0.0
    %420 = vmatpush1.msra.mxu0 0.0
    %421 = vmatprep.subr.mxu0 0.0
    %422 = vmatpush1.msra.mxu0 0.0
    %423 = vmatprep.subr.mxu0 0.0
    %424 = vmatpush1.msra.mxu0 0.0
    %425 = vmatprep.subr.mxu0 0.0
    %426 = vmatpush1.msra.mxu0 0.0
    %427 = vmatprep.subr.mxu0 0.0
    %428 = vmatpush1.msra.mxu0 0.0
    %429 = vmatprep.subr.mxu0 0.0
    %430 = vmatpush1.msra.mxu0 0.0
    %431 = vmatprep.subr.mxu0 0.0
    %432 = vmatpush1.msra.mxu0 0.0
    %433 = vmatprep.subr.mxu0 0.0
    %434 = vmatpush1.msra.mxu0 0.0
    %435 = vmatprep.subr.mxu0 0.0
    %436 = vmatpush1.msra.mxu0 0.0
    %437 = vmatprep.subr.mxu0 0.0
    %438 = vmatpush1.msra.mxu0 0.0
    %439 = vmatprep.subr.mxu0 0.0
    %440 = vmatpush1.msra.mxu0 0.0
    %441 = vmatprep.subr.mxu0 0.0
    %442 = vmatpush1.msra.mxu0 0.0
    %443 = vmatprep.subr.mxu0 0.0
    %444 = vmatpush1.msra.mxu0 0.0
    %445 = vmatprep.subr.mxu0 0.0
    %446 = vmatpush1.msra.mxu0 0.0
    %447 = vmatprep.subr.mxu0 0.0
    %448 = vmatpush1.msra.mxu0 0.0
    %449 = vmatprep.subr.mxu0 0.0
    %450 = vmatpush1.msra.mxu0 0.0
    %451 = vmatprep.mubr.f32.mxu0 0.0
    %452 = vmatmul.mubr.f32.gmra.mrb[0].mxu0 %v377
    %v453 = vpop.f32.mrb[0].mxu0
    %v454 = vadd.f32 0.0, %v453
    %v455 = vpop.f32.mrb[0].mxu0
    %v456 = vadd.f32 0.0, %v455
    %457 = vdwg.mxu0
    %458 = vmatprep.subr.mxu0 %v385
    %459 = vmatpush1.msra.mxu0 %v383
    %460 = vmatprep.subr.mxu0 0.0
    %461 = vmatpush1.msra.mxu0 0.0
    %462 = vmatprep.subr.mxu0 0.0
    %463 = vmatpush1.msra.mxu0 0.0
    %464 = vmatprep.subr.mxu0 0.0
    %465 = vmatpush1.msra.mxu0 0.0
    %466 = vmatprep.subr.mxu0 0.0
    %467 = vmatpush1.msra.mxu0 0.0
    %468 = vmatprep.subr.mxu0 0.0
    %469 = vmatpush1.msra.mxu0 0.0
    %470 = vmatprep.subr.mxu0 0.0
    %471 = vmatpush1.msra.mxu0 0.0
    %472 = vmatprep.subr.mxu0 0.0
    %473 = vmatpush1.msra.mxu0 0.0
    %474 = vmatprep.subr.mxu0 0.0
    %475 = vmatpush1.msra.mxu0 0.0
    %476 = vmatprep.subr.mxu0 0.0
    %477 = vmatpush1.msra.mxu0 0.0
    %478 = vmatprep.subr.mxu0 0.0
    %479 = vmatpush1.msra.mxu0 0.0
    %480 = vmatprep.subr.mxu0 0.0
    %481 = vmatpush1.msra.mxu0 0.0
    %482 = vmatprep.subr.mxu0 0.0
    %483 = vmatpush1.msra.mxu0 0.0
    %484 = vmatprep.subr.mxu0 0.0
    %485 = vmatpush1.msra.mxu0 0.0
    %486 = vmatprep.subr.mxu0 0.0
    %487 = vmatpush1.msra.mxu0 0.0
    %488 = vmatprep.subr.mxu0 0.0
    %489 = vmatpush1.msra.mxu0 0.0
    %490 = vmatprep.subr.mxu0 0.0
    %491 = vmatpush1.msra.mxu0 0.0
    %492 = vmatprep.subr.mxu0 0.0
    %493 = vmatpush1.msra.mxu0 0.0
    %494 = vmatprep.subr.mxu0 0.0
    %495 = vmatpush1.msra.mxu0 0.0
    %496 = vmatprep.subr.mxu0 0.0
    %497 = vmatpush1.msra.mxu0 0.0
    %498 = vmatprep.subr.mxu0 0.0
    %499 = vmatpush1.msra.mxu0 0.0
    %500 = vmatprep.subr.mxu0 0.0
    %501 = vmatpush1.msra.mxu0 0.0
    %502 = vmatprep.subr.mxu0 0.0
    %503 = vmatpush1.msra.mxu0 0.0
    %504 = vmatprep.subr.mxu0 0.0
    %505 = vmatpush1.msra.mxu0 0.0
    %506 = vmatprep.subr.mxu0 0.0
    %507 = vmatpush1.msra.mxu0 0.0
    %508 = vmatprep.subr.mxu0 0.0
    %509 = vmatpush1.msra.mxu0 0.0
    %510 = vmatprep.subr.mxu0 0.0
    %511 = vmatpush1.msra.mxu0 0.0
    %512 = vmatprep.subr.mxu0 0.0
    %513 = vmatpush1.msra.mxu0 0.0
    %514 = vmatprep.subr.mxu0 0.0
    %515 = vmatpush1.msra.mxu0 0.0
    %516 = vmatprep.subr.mxu0 0.0
    %517 = vmatpush1.msra.mxu0 0.0
    %518 = vmatprep.subr.mxu0 0.0
    %519 = vmatpush1.msra.mxu0 0.0
    %520 = vmatprep.subr.mxu0 0.0
    %521 = vmatpush1.msra.mxu0 0.0
    %522 = vmatprep.mubr.f32.mxu0 0.0
    %523 = vmatmul.mubr.f32.gmra.mrb[0].mxu0 %v377
    %v524 = vpop.f32.mrb[0].mxu0
    %v525 = vadd.f32 0.0, %v524
    %v526 = vpop.f32.mrb[0].mxu0
    %v527 = vadd.f32 0.0, %v526
    %528 = vdwg.mxu0
    %v529 = vadd.f32 %v285, %v454
    %v530 = vadd.f32 %v287, %v456
    %v531 = vadd.f32 %v356, %v525
    %v532 = vadd.f32 %v358, %v527
    %533 = vrot.lane.b32.xlu0 %v30, 119
    %v534 = vpop.permute.xlu0 %533
    %535 = vrot.lane.b32.xlu0 %v27, 112
    %v536 = vpop.permute.xlu0 %535
    %537 = vrot.lane.b32.xlu0 %v37, 112
    %v538 = vpop.permute.xlu0 %537
    %539 = vrot.lane.b32.xlu0 %v28, 112
    %v540 = vpop.permute.xlu0 %539
    %541 = vrot.lane.b32.xlu0 %v38, 112
    %v542 = vpop.permute.xlu0 %541
    %543 = vrot.lane.b32.xlu0 %v29, 112
    %v544 = vpop.permute.xlu0 %543
    %vm545 = vcmask 916480
    %v546 = vsel %vm545, %v536, %v538
    %v547 = vsel %vm545, %v538, %v540
    %v548 = vsel %vm545, %v540, %v542
    %v549 = vsel %vm545, %v542, %v544
    %v550 = vsel %vm54, %v534, 0
    %v552 = vsel %vm57, %v546, 0
    %v554 = vsel %vm57, %v547, 0
    %v556 = vsel %vm57, %v548, 0
    %v558 = vsel %vm57, %v549, 0
    %560 = vmatprep.subr.mxu0 %v554
    %561 = vmatpush1.msra.mxu0 %v552
    %562 = vmatprep.subr.mxu0 0.0
    %563 = vmatpush1.msra.mxu0 0.0
    %564 = vmatprep.subr.mxu0 0.0
    %565 = vmatpush1.msra.mxu0 0.0
    %566 = vmatprep.subr.mxu0 0.0
    %567 = vmatpush1.msra.mxu0 0.0
    %568 = vmatprep.subr.mxu0 0.0
    %569 = vmatpush1.msra.mxu0 0.0
    %570 = vmatprep.subr.mxu0 0.0
    %571 = vmatpush1.msra.mxu0 0.0
    %572 = vmatprep.subr.mxu0 0.0
    %573 = vmatpush1.msra.mxu0 0.0
    %574 = vmatprep.subr.mxu0 0.0
    %575 = vmatpush1.msra.mxu0 0.0
    %576 = vmatprep.subr.mxu0 0.0
    %577 = vmatpush1.msra.mxu0 0.0
    %578 = vmatprep.subr.mxu0 0.0
    %579 = vmatpush1.msra.mxu0 0.0
    %580 = vmatprep.subr.mxu0 0.0
    %581 = vmatpush1.msra.mxu0 0.0
    %582 = vmatprep.subr.mxu0 0.0
    %583 = vmatpush1.msra.mxu0 0.0
    %584 = vmatprep.subr.mxu0 0.0
    %585 = vmatpush1.msra.mxu0 0.0
    %586 = vmatprep.subr.mxu0 0.0
    %587 = vmatpush1.msra.mxu0 0.0
    %588 = vmatprep.subr.mxu0 0.0
    %589 = vmatpush1.msra.mxu0 0.0
    %590 = vmatprep.subr.mxu0 0.0
    %591 = vmatpush1.msra.mxu0 0.0
    %592 = vmatprep.subr.mxu0 0.0
    %593 = vmatpush1.msra.mxu0 0.0
    %594 = vmatprep.subr.mxu0 0.0
    %595 = vmatpush1.msra.mxu0 0.0
    %596 = vmatprep.subr.mxu0 0.0
    %597 = vmatpush1.msra.mxu0 0.0
    %598 = vmatprep.subr.mxu0 0.0
    %599 = vmatpush1.msra.mxu0 0.0
    %600 = vmatprep.subr.mxu0 0.0
    %601 = vmatpush1.msra.mxu0 0.0
    %602 = vmatprep.subr.mxu0 0.0
    %603 = vmatpush1.msra.mxu0 0.0
    %604 = vmatprep.subr.mxu0 0.0
    %605 = vmatpush1.msra.mxu0 0.0
    %606 = vmatprep.subr.mxu0 0.0
    %607 = vmatpush1.msra.mxu0 0.0
    %608 = vmatprep.subr.mxu0 0.0
    %609 = vmatpush1.msra.mxu0 0.0
    %610 = vmatprep.subr.mxu0 0.0
    %611 = vmatpush1.msra.mxu0 0.0
    %612 = vmatprep.subr.mxu0 0.0
    %613 = vmatpush1.msra.mxu0 0.0
    %614 = vmatprep.subr.mxu0 0.0
    %615 = vmatpush1.msra.mxu0 0.0
    %616 = vmatprep.subr.mxu0 0.0
    %617 = vmatpush1.msra.mxu0 0.0
    %618 = vmatprep.subr.mxu0 0.0
    %619 = vmatpush1.msra.mxu0 0.0
    %620 = vmatprep.subr.mxu0 0.0
    %621 = vmatpush1.msra.mxu0 0.0
    %622 = vmatprep.subr.mxu0 0.0
    %623 = vmatpush1.msra.mxu0 0.0
    %624 = vmatprep.mubr.f32.mxu0 0.0
    %625 = vmatmul.mubr.f32.gmra.mrb[0].mxu0 %v550
    %v626 = vpop.f32.mrb[0].mxu0
    %v627 = vadd.f32 0.0, %v626
    %v628 = vpop.f32.mrb[0].mxu0
    %v629 = vadd.f32 0.0, %v628
    %630 = vdwg.mxu0
    %631 = vmatprep.subr.mxu0 %v558
    %632 = vmatpush1.msra.mxu0 %v556
    %633 = vmatprep.subr.mxu0 0.0
    %634 = vmatpush1.msra.mxu0 0.0
    %635 = vmatprep.subr.mxu0 0.0
    %636 = vmatpush1.msra.mxu0 0.0
    %637 = vmatprep.subr.mxu0 0.0
    %638 = vmatpush1.msra.mxu0 0.0
    %639 = vmatprep.subr.mxu0 0.0
    %640 = vmatpush1.msra.mxu0 0.0
    %641 = vmatprep.subr.mxu0 0.0
    %642 = vmatpush1.msra.mxu0 0.0
    %643 = vmatprep.subr.mxu0 0.0
    %644 = vmatpush1.msra.mxu0 0.0
    %645 = vmatprep.subr.mxu0 0.0
    %646 = vmatpush1.msra.mxu0 0.0
    %647 = vmatprep.subr.mxu0 0.0
    %648 = vmatpush1.msra.mxu0 0.0
    %649 = vmatprep.subr.mxu0 0.0
    %650 = vmatpush1.msra.mxu0 0.0
    %651 = vmatprep.subr.mxu0 0.0
    %652 = vmatpush1.msra.mxu0 0.0
    %653 = vmatprep.subr.mxu0 0.0
    %654 = vmatpush1.msra.mxu0 0.0
    %655 = vmatprep.subr.mxu0 0.0
    %656 = vmatpush1.msra.mxu0 0.0
    %657 = vmatprep.subr.mxu0 0.0
    %658 = vmatpush1.msra.mxu0 0.0
    %659 = vmatprep.subr.mxu0 0.0
    %660 = vmatpush1.msra.mxu0 0.0
    %661 = vmatprep.subr.mxu0 0.0
    %662 = vmatpush1.msra.mxu0 0.0
    %663 = vmatprep.subr.mxu0 0.0
    %664 = vmatpush1.msra.mxu0 0.0
    %665 = vmatprep.subr.mxu0 0.0
    %666 = vmatpush1.msra.mxu0 0.0
    %667 = vmatprep.subr.mxu0 0.0
    %668 = vmatpush1.msra.mxu0 0.0
    %669 = vmatprep.subr.mxu0 0.0
    %670 = vmatpush1.msra.mxu0 0.0
    %671 = vmatprep.subr.mxu0 0.0
    %672 = vmatpush1.msra.mxu0 0.0
    %673 = vmatprep.subr.mxu0 0.0
    %674 = vmatpush1.msra.mxu0 0.0
    %675 = vmatprep.subr.mxu0 0.0
    %676 = vmatpush1.msra.mxu0 0.0
    %677 = vmatprep.subr.mxu0 0.0
    %678 = vmatpush1.msra.mxu0 0.0
    %679 = vmatprep.subr.mxu0 0.0
    %680 = vmatpush1.msra.mxu0 0.0
    %681 = vmatprep.subr.mxu0 0.0
    %682 = vmatpush1.msra.mxu0 0.0
    %683 = vmatprep.subr.mxu0 0.0
    %684 = vmatpush1.msra.mxu0 0.0
    %685 = vmatprep.subr.mxu0 0.0
    %686 = vmatpush1.msra.mxu0 0.0
    %687 = vmatprep.subr.mxu0 0.0
    %688 = vmatpush1.msra.mxu0 0.0
    %689 = vmatprep.subr.mxu0 0.0
    %690 = vmatpush1.msra.mxu0 0.0
    %691 = vmatprep.subr.mxu0 0.0
    %692 = vmatpush1.msra.mxu0 0.0
    %693 = vmatprep.subr.mxu0 0.0
    %694 = vmatpush1.msra.mxu0 0.0
    %695 = vmatprep.mubr.f32.mxu0 0.0
    %696 = vmatmul.mubr.f32.gmra.mrb[0].mxu0 %v550
    %v697 = vpop.f32.mrb[0].mxu0
    %v698 = vadd.f32 0.0, %v697
    %v699 = vpop.f32.mrb[0].mxu0
    %v700 = vadd.f32 0.0, %v699
    %701 = vdwg.mxu0
    %v702 = vadd.f32 %v529, %v627
    %v703 = vadd.f32 %v530, %v629
    %v704 = vadd.f32 %v531, %v698
    %v705 = vadd.f32 %v532, %v700
    %706 = vrot.lane.b32.xlu0 %v30, 116
    %v707 = vpop.permute.xlu0 %706
    %708 = vrot.lane.b32.xlu0 %v27, 111
    %v709 = vpop.permute.xlu0 %708
    %710 = vrot.lane.b32.xlu0 %v37, 111
    %v711 = vpop.permute.xlu0 %710
    %712 = vrot.lane.b32.xlu0 %v28, 111
    %v713 = vpop.permute.xlu0 %712
    %714 = vrot.lane.b32.xlu0 %v38, 111
    %v715 = vpop.permute.xlu0 %714
    %716 = vrot.lane.b32.xlu0 %v29, 111
    %v717 = vpop.permute.xlu0 %716
    %vm718 = vcmask 908288
    %v719 = vsel %vm718, %v709, %v711
    %v720 = vsel %vm718, %v711, %v713
    %v721 = vsel %vm718, %v713, %v715
    %v722 = vsel %vm718, %v715, %v717
    %v723 = vsel %vm54, %v707, 0
    %v725 = vsel %vm57, %v719, 0
    %v727 = vsel %vm57, %v720, 0
    %v729 = vsel %vm57, %v721, 0
    %v731 = vsel %vm57, %v722, 0
    %733 = vmatprep.subr.mxu0 %v727
    %734 = vmatpush1.msra.mxu0 %v725
    %735 = vmatprep.subr.mxu0 0.0
    %736 = vmatpush1.msra.mxu0 0.0
    %737 = vmatprep.subr.mxu0 0.0
    %738 = vmatpush1.msra.mxu0 0.0
    %739 = vmatprep.subr.mxu0 0.0
    %740 = vmatpush1.msra.mxu0 0.0
    %741 = vmatprep.subr.mxu0 0.0
    %742 = vmatpush1.msra.mxu0 0.0
    %743 = vmatprep.subr.mxu0 0.0
    %744 = vmatpush1.msra.mxu0 0.0
    %745 = vmatprep.subr.mxu0 0.0
    %746 = vmatpush1.msra.mxu0 0.0
    %747 = vmatprep.subr.mxu0 0.0
    %748 = vmatpush1.msra.mxu0 0.0
    %749 = vmatprep.subr.mxu0 0.0
    %750 = vmatpush1.msra.mxu0 0.0
    %751 = vmatprep.subr.mxu0 0.0
    %752 = vmatpush1.msra.mxu0 0.0
    %753 = vmatprep.subr.mxu0 0.0
    %754 = vmatpush1.msra.mxu0 0.0
    %755 = vmatprep.subr.mxu0 0.0
    %756 = vmatpush1.msra.mxu0 0.0
    %757 = vmatprep.subr.mxu0 0.0
    %758 = vmatpush1.msra.mxu0 0.0
    %759 = vmatprep.subr.mxu0 0.0
    %760 = vmatpush1.msra.mxu0 0.0
    %761 = vmatprep.subr.mxu0 0.0
    %762 = vmatpush1.msra.mxu0 0.0
    %763 = vmatprep.subr.mxu0 0.0
    %764 = vmatpush1.msra.mxu0 0.0
    %765 = vmatprep.subr.mxu0 0.0
    %766 = vmatpush1.msra.mxu0 0.0
    %767 = vmatprep.subr.mxu0 0.0
    %768 = vmatpush1.msra.mxu0 0.0
    %769 = vmatprep.subr.mxu0 0.0
    %770 = vmatpush1.msra.mxu0 0.0
    %771 = vmatprep.subr.mxu0 0.0
    %772 = vmatpush1.msra.mxu0 0.0
    %773 = vmatprep.subr.mxu0 0.0
    %774 = vmatpush1.msra.mxu0 0.0
    %775 = vmatprep.subr.mxu0 0.0
    %776 = vmatpush1.msra.mxu0 0.0
    %777 = vmatprep.subr.mxu0 0.0
    %778 = vmatpush1.msra.mxu0 0.0
    %779 = vmatprep.subr.mxu0 0.0
    %780 = vmatpush1.msra.mxu0 0.0
    %781 = vmatprep.subr.mxu0 0.0
    %782 = vmatpush1.msra.mxu0 0.0
    %783 = vmatprep.subr.mxu0 0.0
    %784 = vmatpush1.msra.mxu0 0.0
    %785 = vmatprep.subr.mxu0 0.0
    %786 = vmatpush1.msra.mxu0 0.0
    %787 = vmatprep.subr.mxu0 0.0
    %788 = vmatpush1.msra.mxu0 0.0
    %789 = vmatprep.subr.mxu0 0.0
    %790 = vmatpush1.msra.mxu0 0.0
    %791 = vmatprep.subr.mxu0 0.0
    %792 = vmatpush1.msra.mxu0 0.0
    %793 = vmatprep.subr.mxu0 0.0
    %794 = vmatpush1.msra.mxu0 0.0
    %795 = vmatprep.subr.mxu0 0.0
    %796 = vmatpush1.msra.mxu0 0.0
    %797 = vmatprep.mubr.f32.mxu0 0.0
    %798 = vmatmul.mubr.f32.gmra.mrb[0].mxu0 %v723
    %v799 = vpop.f32.mrb[0].mxu0
    %v800 = vadd.f32 0.0, %v799
    %v801 = vpop.f32.mrb[0].mxu0
    %v802 = vadd.f32 0.0, %v801
    %803 = vdwg.mxu0
    %804 = vmatprep.subr.mxu0 %v731
    %805 = vmatpush1.msra.mxu0 %v729
    %806 = vmatprep.subr.mxu0 0.0
    %807 = vmatpush1.msra.mxu0 0.0
    %808 = vmatprep.subr.mxu0 0.0
    %809 = vmatpush1.msra.mxu0 0.0
    %810 = vmatprep.subr.mxu0 0.0
    %811 = vmatpush1.msra.mxu0 0.0
    %812 = vmatprep.subr.mxu0 0.0
    %813 = vmatpush1.msra.mxu0 0.0
    %814 = vmatprep.subr.mxu0 0.0
    %815 = vmatpush1.msra.mxu0 0.0
    %816 = vmatprep.subr.mxu0 0.0
    %817 = vmatpush1.msra.mxu0 0.0
    %818 = vmatprep.subr.mxu0 0.0
    %819 = vmatpush1.msra.mxu0 0.0
    %820 = vmatprep.subr.mxu0 0.0
    %821 = vmatpush1.msra.mxu0 0.0
    %822 = vmatprep.subr.mxu0 0.0
    %823 = vmatpush1.msra.mxu0 0.0
    %824 = vmatprep.subr.mxu0 0.0
    %825 = vmatpush1.msra.mxu0 0.0
    %826 = vmatprep.subr.mxu0 0.0
    %827 = vmatpush1.msra.mxu0 0.0
    %828 = vmatprep.subr.mxu0 0.0
    %829 = vmatpush1.msra.mxu0 0.0
    %830 = vmatprep.subr.mxu0 0.0
    %831 = vmatpush1.msra.mxu0 0.0
    %832 = vmatprep.subr.mxu0 0.0
    %833 = vmatpush1.msra.mxu0 0.0
    %834 = vmatprep.subr.mxu0 0.0
    %835 = vmatpush1.msra.mxu0 0.0
    %836 = vmatprep.subr.mxu0 0.0
    %837 = vmatpush1.msra.mxu0 0.0
    %838 = vmatprep.subr.mxu0 0.0
    %839 = vmatpush1.msra.mxu0 0.0
    %840 = vmatprep.subr.mxu0 0.0
    %841 = vmatpush1.msra.mxu0 0.0
    %842 = vmatprep.subr.mxu0 0.0
    %843 = vmatpush1.msra.mxu0 0.0
    %844 = vmatprep.subr.mxu0 0.0
    %845 = vmatpush1.msra.mxu0 0.0
    %846 = vmatprep.subr.mxu0 0.0
    %847 = vmatpush1.msra.mxu0 0.0
    %848 = vmatprep.subr.mxu0 0.0
    %849 = vmatpush1.msra.mxu0 0.0
    %850 = vmatprep.subr.mxu0 0.0
    %851 = vmatpush1.msra.mxu0 0.0
    %852 = vmatprep.subr.mxu0 0.0
    %853 = vmatpush1.msra.mxu0 0.0
    %854 = vmatprep.subr.mxu0 0.0
    %855 = vmatpush1.msra.mxu0 0.0
    %856 = vmatprep.subr.mxu0 0.0
    %857 = vmatpush1.msra.mxu0 0.0
    %858 = vmatprep.subr.mxu0 0.0
    %859 = vmatpush1.msra.mxu0 0.0
    %860 = vmatprep.subr.mxu0 0.0
    %861 = vmatpush1.msra.mxu0 0.0
    %862 = vmatprep.subr.mxu0 0.0
    %863 = vmatpush1.msra.mxu0 0.0
    %864 = vmatprep.subr.mxu0 0.0
    %865 = vmatpush1.msra.mxu0 0.0
    %866 = vmatprep.subr.mxu0 0.0
    %867 = vmatpush1.msra.mxu0 0.0
    %868 = vmatprep.mubr.f32.mxu0 0.0
    %869 = vmatmul.mubr.f32.gmra.mrb[0].mxu0 %v723
    %v870 = vpop.f32.mrb[0].mxu0
    %v871 = vadd.f32 0.0, %v870
    %v872 = vpop.f32.mrb[0].mxu0
    %v873 = vadd.f32 0.0, %v872
    %874 = vdwg.mxu0
    %v875 = vadd.f32 %v702, %v800
    %v876 = vadd.f32 %v703, %v802
    %v877 = vadd.f32 %v704, %v871
    %v878 = vadd.f32 %v705, %v873
    %879 = vrot.lane.b32.xlu0 %v30, 113
    %v880 = vpop.permute.xlu0 %879
    %881 = vrot.lane.b32.xlu0 %v27, 110
    %v882 = vpop.permute.xlu0 %881
    %883 = vrot.lane.b32.xlu0 %v37, 110
    %v884 = vpop.permute.xlu0 %883
    %885 = vrot.lane.b32.xlu0 %v28, 110
    %v886 = vpop.permute.xlu0 %885
    %887 = vrot.lane.b32.xlu0 %v38, 110
    %v888 = vpop.permute.xlu0 %887
    %889 = vrot.lane.b32.xlu0 %v29, 110
    %v890 = vpop.permute.xlu0 %889
    %vm891 = vcmask 900096
    %v892 = vsel %vm891, %v882, %v884
    %v893 = vsel %vm891, %v884, %v886
    %v894 = vsel %vm891, %v886, %v888
    %v895 = vsel %vm891, %v888, %v890
    %v896 = vsel %vm54, %v880, 0
    %v898 = vsel %vm57, %v892, 0
    %v900 = vsel %vm57, %v893, 0
    %v902 = vsel %vm57, %v894, 0
    %v904 = vsel %vm57, %v895, 0
    %906 = vmatprep.subr.mxu0 %v900
    %907 = vmatpush1.msra.mxu0 %v898
    %908 = vmatprep.subr.mxu0 0.0
    %909 = vmatpush1.msra.mxu0 0.0
    %910 = vmatprep.subr.mxu0 0.0
    %911 = vmatpush1.msra.mxu0 0.0
    %912 = vmatprep.subr.mxu0 0.0
    %913 = vmatpush1.msra.mxu0 0.0
    %914 = vmatprep.subr.mxu0 0.0
    %915 = vmatpush1.msra.mxu0 0.0
    %916 = vmatprep.subr.mxu0 0.0
    %917 = vmatpush1.msra.mxu0 0.0
    %918 = vmatprep.subr.mxu0 0.0
    %919 = vmatpush1.msra.mxu0 0.0
    %920 = vmatprep.subr.mxu0 0.0
    %921 = vmatpush1.msra.mxu0 0.0
    %922 = vmatprep.subr.mxu0 0.0
    %923 = vmatpush1.msra.mxu0 0.0
    %924 = vmatprep.subr.mxu0 0.0
    %925 = vmatpush1.msra.mxu0 0.0
    %926 = vmatprep.subr.mxu0 0.0
    %927 = vmatpush1.msra.mxu0 0.0
    %928 = vmatprep.subr.mxu0 0.0
    %929 = vmatpush1.msra.mxu0 0.0
    %930 = vmatprep.subr.mxu0 0.0
    %931 = vmatpush1.msra.mxu0 0.0
    %932 = vmatprep.subr.mxu0 0.0
    %933 = vmatpush1.msra.mxu0 0.0
    %934 = vmatprep.subr.mxu0 0.0
    %935 = vmatpush1.msra.mxu0 0.0
    %936 = vmatprep.subr.mxu0 0.0
    %937 = vmatpush1.msra.mxu0 0.0
    %938 = vmatprep.subr.mxu0 0.0
    %939 = vmatpush1.msra.mxu0 0.0
    %940 = vmatprep.subr.mxu0 0.0
    %941 = vmatpush1.msra.mxu0 0.0
    %942 = vmatprep.subr.mxu0 0.0
    %943 = vmatpush1.msra.mxu0 0.0
    %944 = vmatprep.subr.mxu0 0.0
    %945 = vmatpush1.msra.mxu0 0.0
    %946 = vmatprep.subr.mxu0 0.0
    %947 = vmatpush1.msra.mxu0 0.0
    %948 = vmatprep.subr.mxu0 0.0
    %949 = vmatpush1.msra.mxu0 0.0
    %950 = vmatprep.subr.mxu0 0.0
    %951 = vmatpush1.msra.mxu0 0.0
    %952 = vmatprep.subr.mxu0 0.0
    %953 = vmatpush1.msra.mxu0 0.0
    %954 = vmatprep.subr.mxu0 0.0
    %955 = vmatpush1.msra.mxu0 0.0
    %956 = vmatprep.subr.mxu0 0.0
    %957 = vmatpush1.msra.mxu0 0.0
    %958 = vmatprep.subr.mxu0 0.0
    %959 = vmatpush1.msra.mxu0 0.0
    %960 = vmatprep.subr.mxu0 0.0
    %961 = vmatpush1.msra.mxu0 0.0
    %962 = vmatprep.subr.mxu0 0.0
    %963 = vmatpush1.msra.mxu0 0.0
    %964 = vmatprep.subr.mxu0 0.0
    %965 = vmatpush1.msra.mxu0 0.0
    %966 = vmatprep.subr.mxu0 0.0
    %967 = vmatpush1.msra.mxu0 0.0
    %968 = vmatprep.subr.mxu0 0.0
    %969 = vmatpush1.msra.mxu0 0.0
    %970 = vmatprep.mubr.f32.mxu0 0.0
    %971 = vmatmul.mubr.f32.gmra.mrb[0].mxu0 %v896
    %v972 = vpop.f32.mrb[0].mxu0
    %v973 = vadd.f32 0.0, %v972
    %v974 = vpop.f32.mrb[0].mxu0
    %v975 = vadd.f32 0.0, %v974
    %976 = vdwg.mxu0
    %977 = vmatprep.subr.mxu0 %v904
    %978 = vmatpush1.msra.mxu0 %v902
    %979 = vmatprep.subr.mxu0 0.0
    %980 = vmatpush1.msra.mxu0 0.0
    %981 = vmatprep.subr.mxu0 0.0
    %982 = vmatpush1.msra.mxu0 0.0
    %983 = vmatprep.subr.mxu0 0.0
    %984 = vmatpush1.msra.mxu0 0.0
    %985 = vmatprep.subr.mxu0 0.0
    %986 = vmatpush1.msra.mxu0 0.0
    %987 = vmatprep.subr.mxu0 0.0
    %988 = vmatpush1.msra.mxu0 0.0
    %989 = vmatprep.subr.mxu0 0.0
    %990 = vmatpush1.msra.mxu0 0.0
    %991 = vmatprep.subr.mxu0 0.0
    %992 = vmatpush1.msra.mxu0 0.0
    %993 = vmatprep.subr.mxu0 0.0
    %994 = vmatpush1.msra.mxu0 0.0
    %995 = vmatprep.subr.mxu0 0.0
    %996 = vmatpush1.msra.mxu0 0.0
    %997 = vmatprep.subr.mxu0 0.0
    %998 = vmatpush1.msra.mxu0 0.0
    %999 = vmatprep.subr.mxu0 0.0
    %1000 = vmatpush1.msra.mxu0 0.0
    %1001 = vmatprep.subr.mxu0 0.0
    %1002 = vmatpush1.msra.mxu0 0.0
    %1003 = vmatprep.subr.mxu0 0.0
    %1004 = vmatpush1.msra.mxu0 0.0
    %1005 = vmatprep.subr.mxu0 0.0
    %1006 = vmatpush1.msra.mxu0 0.0
    %1007 = vmatprep.subr.mxu0 0.0
    %1008 = vmatpush1.msra.mxu0 0.0
    %1009 = vmatprep.subr.mxu0 0.0
    %1010 = vmatpush1.msra.mxu0 0.0
    %1011 = vmatprep.subr.mxu0 0.0
    %1012 = vmatpush1.msra.mxu0 0.0
    %1013 = vmatprep.subr.mxu0 0.0
    %1014 = vmatpush1.msra.mxu0 0.0
    %1015 = vmatprep.subr.mxu0 0.0
    %1016 = vmatpush1.msra.mxu0 0.0
    %1017 = vmatprep.subr.mxu0 0.0
    %1018 = vmatpush1.msra.mxu0 0.0
    %1019 = vmatprep.subr.mxu0 0.0
    %1020 = vmatpush1.msra.mxu0 0.0
    %1021 = vmatprep.subr.mxu0 0.0
    %1022 = vmatpush1.msra.mxu0 0.0
    %1023 = vmatprep.subr.mxu0 0.0
    %1024 = vmatpush1.msra.mxu0 0.0
    %1025 = vmatprep.subr.mxu0 0.0
    %1026 = vmatpush1.msra.mxu0 0.0
    %1027 = vmatprep.subr.mxu0 0.0
    %1028 = vmatpush1.msra.mxu0 0.0
    %1029 = vmatprep.subr.mxu0 0.0
    %1030 = vmatpush1.msra.mxu0 0.0
    %1031 = vmatprep.subr.mxu0 0.0
    %1032 = vmatpush1.msra.mxu0 0.0
    %1033 = vmatprep.subr.mxu0 0.0
    %1034 = vmatpush1.msra.mxu0 0.0
    %1035 = vmatprep.subr.mxu0 0.0
    %1036 = vmatpush1.msra.mxu0 0.0
    %1037 = vmatprep.subr.mxu0 0.0
    %1038 = vmatpush1.msra.mxu0 0.0
    %1039 = vmatprep.subr.mxu0 0.0
    %1040 = vmatpush1.msra.mxu0 0.0
    %1041 = vmatprep.mubr.f32.mxu0 0.0
    %1042 = vmatmul.mubr.f32.gmra.mrb[0].mxu0 %v896
    %v1043 = vpop.f32.mrb[0].mxu0
    %v1044 = vadd.f32 0.0, %v1043
    %v1045 = vpop.f32.mrb[0].mxu0
    %v1046 = vadd.f32 0.0, %v1045
    %1047 = vdwg.mxu0
    %v1048 = vadd.f32 %v875, %v973
    %v1049 = vadd.f32 %v876, %v975
    %v1050 = vadd.f32 %v877, %v1044
    %v1051 = vadd.f32 %v878, %v1046
    %1052 = vrot.lane.b32.xlu0 %v30, 110
    %v1053 = vpop.permute.xlu0 %1052
    %1054 = vrot.lane.b32.xlu0 %v27, 96
    %v1055 = vpop.permute.xlu0 %1054
    %1056 = vrot.lane.b32.xlu0 %v37, 96
    %v1057 = vpop.permute.xlu0 %1056
    %1058 = vrot.lane.b32.xlu0 %v28, 96
    %v1059 = vpop.permute.xlu0 %1058
    %1060 = vrot.lane.b32.xlu0 %v38, 96
    %v1061 = vpop.permute.xlu0 %1060
    %1062 = vrot.lane.b32.xlu0 %v29, 96
    %v1063 = vpop.permute.xlu0 %1062
    %vm1064 = vcmask 785408
    %v1065 = vsel %vm1064, %v1055, %v1057
    %v1066 = vsel %vm1064, %v1057, %v1059
    %v1067 = vsel %vm1064, %v1059, %v1061
    %v1068 = vsel %vm1064, %v1061, %v1063
    %v1069 = vsel %vm54, %v1053, 0
    %v1071 = vsel %vm57, %v1065, 0
    %v1073 = vsel %vm57, %v1066, 0
    %v1075 = vsel %vm57, %v1067, 0
    %v1077 = vsel %vm57, %v1068, 0
    %1079 = vmatprep.subr.mxu0 %v1073
    %1080 = vmatpush1.msra.mxu0 %v1071
    %1081 = vmatprep.subr.mxu0 0.0
    %1082 = vmatpush1.msra.mxu0 0.0
    %1083 = vmatprep.subr.mxu0 0.0
    %1084 = vmatpush1.msra.mxu0 0.0
    %1085 = vmatprep.subr.mxu0 0.0
    %1086 = vmatpush1.msra.mxu0 0.0
    %1087 = vmatprep.subr.mxu0 0.0
    %1088 = vmatpush1.msra.mxu0 0.0
    %1089 = vmatprep.subr.mxu0 0.0
    %1090 = vmatpush1.msra.mxu0 0.0
    %1091 = vmatprep.subr.mxu0 0.0
    %1092 = vmatpush1.msra.mxu0 0.0
    %1093 = vmatprep.subr.mxu0 0.0
    %1094 = vmatpush1.msra.mxu0 0.0
    %1095 = vmatprep.subr.mxu0 0.0
    %1096 = vmatpush1.msra.mxu0 0.0
    %1097 = vmatprep.subr.mxu0 0.0
    %1098 = vmatpush1.msra.mxu0 0.0
    %1099 = vmatprep.subr.mxu0 0.0
    %1100 = vmatpush1.msra.mxu0 0.0
    %1101 = vmatprep.subr.mxu0 0.0
    %1102 = vmatpush1.msra.mxu0 0.0
    %1103 = vmatprep.subr.mxu0 0.0
    %1104 = vmatpush1.msra.mxu0 0.0
    %1105 = vmatprep.subr.mxu0 0.0
    %1106 = vmatpush1.msra.mxu0 0.0
    %1107 = vmatprep.subr.mxu0 0.0
    %1108 = vmatpush1.msra.mxu0 0.0
    %1109 = vmatprep.subr.mxu0 0.0
    %1110 = vmatpush1.msra.mxu0 0.0
    %1111 = vmatprep.subr.mxu0 0.0
    %1112 = vmatpush1.msra.mxu0 0.0
    %1113 = vmatprep.subr.mxu0 0.0
    %1114 = vmatpush1.msra.mxu0 0.0
    %1115 = vmatprep.subr.mxu0 0.0
    %1116 = vmatpush1.msra.mxu0 0.0
    %1117 = vmatprep.subr.mxu0 0.0
    %1118 = vmatpush1.msra.mxu0 0.0
    %1119 = vmatprep.subr.mxu0 0.0
    %1120 = vmatpush1.msra.mxu0 0.0
    %1121 = vmatprep.subr.mxu0 0.0
    %1122 = vmatpush1.msra.mxu0 0.0
    %1123 = vmatprep.subr.mxu0 0.0
    %1124 = vmatpush1.msra.mxu0 0.0
    %1125 = vmatprep.subr.mxu0 0.0
    %1126 = vmatpush1.msra.mxu0 0.0
    %1127 = vmatprep.subr.mxu0 0.0
    %1128 = vmatpush1.msra.mxu0 0.0
    %1129 = vmatprep.subr.mxu0 0.0
    %1130 = vmatpush1.msra.mxu0 0.0
    %1131 = vmatprep.subr.mxu0 0.0
    %1132 = vmatpush1.msra.mxu0 0.0
    %1133 = vmatprep.subr.mxu0 0.0
    %1134 = vmatpush1.msra.mxu0 0.0
    %1135 = vmatprep.subr.mxu0 0.0
    %1136 = vmatpush1.msra.mxu0 0.0
    %1137 = vmatprep.subr.mxu0 0.0
    %1138 = vmatpush1.msra.mxu0 0.0
    %1139 = vmatprep.subr.mxu0 0.0
    %1140 = vmatpush1.msra.mxu0 0.0
    %1141 = vmatprep.subr.mxu0 0.0
    %1142 = vmatpush1.msra.mxu0 0.0
    %1143 = vmatprep.mubr.f32.mxu0 0.0
    %1144 = vmatmul.mubr.f32.gmra.mrb[0].mxu0 %v1069
    %v1145 = vpop.f32.mrb[0].mxu0
    %v1146 = vadd.f32 0.0, %v1145
    %v1147 = vpop.f32.mrb[0].mxu0
    %v1148 = vadd.f32 0.0, %v1147
    %1149 = vdwg.mxu0
    %1150 = vmatprep.subr.mxu0 %v1077
    %1151 = vmatpush1.msra.mxu0 %v1075
    %1152 = vmatprep.subr.mxu0 0.0
    %1153 = vmatpush1.msra.mxu0 0.0
    %1154 = vmatprep.subr.mxu0 0.0
    %1155 = vmatpush1.msra.mxu0 0.0
    %1156 = vmatprep.subr.mxu0 0.0
    %1157 = vmatpush1.msra.mxu0 0.0
    %1158 = vmatprep.subr.mxu0 0.0
    %1159 = vmatpush1.msra.mxu0 0.0
    %1160 = vmatprep.subr.mxu0 0.0
    %1161 = vmatpush1.msra.mxu0 0.0
    %1162 = vmatprep.subr.mxu0 0.0
    %1163 = vmatpush1.msra.mxu0 0.0
    %1164 = vmatprep.subr.mxu0 0.0
    %1165 = vmatpush1.msra.mxu0 0.0
    %1166 = vmatprep.subr.mxu0 0.0
    %1167 = vmatpush1.msra.mxu0 0.0
    %1168 = vmatprep.subr.mxu0 0.0
    %1169 = vmatpush1.msra.mxu0 0.0
    %1170 = vmatprep.subr.mxu0 0.0
    %1171 = vmatpush1.msra.mxu0 0.0
    %1172 = vmatprep.subr.mxu0 0.0
    %1173 = vmatpush1.msra.mxu0 0.0
    %1174 = vmatprep.subr.mxu0 0.0
    %1175 = vmatpush1.msra.mxu0 0.0
    %1176 = vmatprep.subr.mxu0 0.0
    %1177 = vmatpush1.msra.mxu0 0.0
    %1178 = vmatprep.subr.mxu0 0.0
    %1179 = vmatpush1.msra.mxu0 0.0
    %1180 = vmatprep.subr.mxu0 0.0
    %1181 = vmatpush1.msra.mxu0 0.0
    %1182 = vmatprep.subr.mxu0 0.0
    %1183 = vmatpush1.msra.mxu0 0.0
    %1184 = vmatprep.subr.mxu0 0.0
    %1185 = vmatpush1.msra.mxu0 0.0
    %1186 = vmatprep.subr.mxu0 0.0
    %1187 = vmatpush1.msra.mxu0 0.0
    %1188 = vmatprep.subr.mxu0 0.0
    %1189 = vmatpush1.msra.mxu0 0.0
    %1190 = vmatprep.subr.mxu0 0.0
    %1191 = vmatpush1.msra.mxu0 0.0
    %1192 = vmatprep.subr.mxu0 0.0
    %1193 = vmatpush1.msra.mxu0 0.0
    %1194 = vmatprep.subr.mxu0 0.0
    %1195 = vmatpush1.msra.mxu0 0.0
    %1196 = vmatprep.subr.mxu0 0.0
    %1197 = vmatpush1.msra.mxu0 0.0
    %1198 = vmatprep.subr.mxu0 0.0
    %1199 = vmatpush1.msra.mxu0 0.0
    %1200 = vmatprep.subr.mxu0 0.0
    %1201 = vmatpush1.msra.mxu0 0.0
    %1202 = vmatprep.subr.mxu0 0.0
    %1203 = vmatpush1.msra.mxu0 0.0
    %1204 = vmatprep.subr.mxu0 0.0
    %1205 = vmatpush1.msra.mxu0 0.0
    %1206 = vmatprep.subr.mxu0 0.0
    %1207 = vmatpush1.msra.mxu0 0.0
    %1208 = vmatprep.subr.mxu0 0.0
    %1209 = vmatpush1.msra.mxu0 0.0
    %1210 = vmatprep.subr.mxu0 0.0
    %1211 = vmatpush1.msra.mxu0 0.0
    %1212 = vmatprep.subr.mxu0 0.0
    %1213 = vmatpush1.msra.mxu0 0.0
    %1214 = vmatprep.mubr.f32.mxu0 0.0
    %1215 = vmatmul.mubr.f32.gmra.mrb[0].mxu0 %v1069
    %v1216 = vpop.f32.mrb[0].mxu0
    %v1217 = vadd.f32 0.0, %v1216
    %v1218 = vpop.f32.mrb[0].mxu0
    %v1219 = vadd.f32 0.0, %v1218
    %1220 = vdwg.mxu0
    %v1221 = vadd.f32 %v1048, %v1146
    %v1222 = vadd.f32 %v1049, %v1148
    %v1223 = vadd.f32 %v1050, %v1217
    %v1224 = vadd.f32 %v1051, %v1219
    %1225 = vrot.lane.b32.xlu0 %v30, 107
    %v1226 = vpop.permute.xlu0 %1225
    %1227 = vrot.lane.b32.xlu0 %v27, 95
    %v1228 = vpop.permute.xlu0 %1227
    %1229 = vrot.lane.b32.xlu0 %v37, 95
    %v1230 = vpop.permute.xlu0 %1229
    %1231 = vrot.lane.b32.xlu0 %v28, 95
    %v1232 = vpop.permute.xlu0 %1231
    %1233 = vrot.lane.b32.xlu0 %v38, 95
    %v1234 = vpop.permute.xlu0 %1233
    %1235 = vrot.lane.b32.xlu0 %v29, 95
    %v1236 = vpop.permute.xlu0 %1235
    %vm1237 = vcmask 777216
    %v1238 = vsel %vm1237, %v1228, %v1230
    %v1239 = vsel %vm1237, %v1230, %v1232
    %v1240 = vsel %vm1237, %v1232, %v1234
    %v1241 = vsel %vm1237, %v1234, %v1236
    %v1242 = vsel %vm54, %v1226, 0
    %v1244 = vsel %vm57, %v1238, 0
    %v1246 = vsel %vm57, %v1239, 0
    %v1248 = vsel %vm57, %v1240, 0
    %v1250 = vsel %vm57, %v1241, 0
    %1252 = vmatprep.subr.mxu0 %v1246
    %1253 = vmatpush1.msra.mxu0 %v1244
    %1254 = vmatprep.subr.mxu0 0.0
    %1255 = vmatpush1.msra.mxu0 0.0
    %1256 = vmatprep.subr.mxu0 0.0
    %1257 = vmatpush1.msra.mxu0 0.0
    %1258 = vmatprep.subr.mxu0 0.0
    %1259 = vmatpush1.msra.mxu0 0.0
    %1260 = vmatprep.subr.mxu0 0.0
    %1261 = vmatpush1.msra.mxu0 0.0
    %1262 = vmatprep.subr.mxu0 0.0
    %1263 = vmatpush1.msra.mxu0 0.0
    %1264 = vmatprep.subr.mxu0 0.0
    %1265 = vmatpush1.msra.mxu0 0.0
    %1266 = vmatprep.subr.mxu0 0.0
    %1267 = vmatpush1.msra.mxu0 0.0
    %1268 = vmatprep.subr.mxu0 0.0
    %1269 = vmatpush1.msra.mxu0 0.0
    %1270 = vmatprep.subr.mxu0 0.0
    %1271 = vmatpush1.msra.mxu0 0.0
    %1272 = vmatprep.subr.mxu0 0.0
    %1273 = vmatpush1.msra.mxu0 0.0
    %1274 = vmatprep.subr.mxu0 0.0
    %1275 = vmatpush1.msra.mxu0 0.0
    %1276 = vmatprep.subr.mxu0 0.0
    %1277 = vmatpush1.msra.mxu0 0.0
    %1278 = vmatprep.subr.mxu0 0.0
    %1279 = vmatpush1.msra.mxu0 0.0
    %1280 = vmatprep.subr.mxu0 0.0
    %1281 = vmatpush1.msra.mxu0 0.0
    %1282 = vmatprep.subr.mxu0 0.0
    %1283 = vmatpush1.msra.mxu0 0.0
    %1284 = vmatprep.subr.mxu0 0.0
    %1285 = vmatpush1.msra.mxu0 0.0
    %1286 = vmatprep.subr.mxu0 0.0
    %1287 = vmatpush1.msra.mxu0 0.0
    %1288 = vmatprep.subr.mxu0 0.0
    %1289 = vmatpush1.msra.mxu0 0.0
    %1290 = vmatprep.subr.mxu0 0.0
    %1291 = vmatpush1.msra.mxu0 0.0
    %1292 = vmatprep.subr.mxu0 0.0
    %1293 = vmatpush1.msra.mxu0 0.0
    %1294 = vmatprep.subr.mxu0 0.0
    %1295 = vmatpush1.msra.mxu0 0.0
    %1296 = vmatprep.subr.mxu0 0.0
    %1297 = vmatpush1.msra.mxu0 0.0
    %1298 = vmatprep.subr.mxu0 0.0
    %1299 = vmatpush1.msra.mxu0 0.0
    %1300 = vmatprep.subr.mxu0 0.0
    %1301 = vmatpush1.msra.mxu0 0.0
    %1302 = vmatprep.subr.mxu0 0.0
    %1303 = vmatpush1.msra.mxu0 0.0
    %1304 = vmatprep.subr.mxu0 0.0
    %1305 = vmatpush1.msra.mxu0 0.0
    %1306 = vmatprep.subr.mxu0 0.0
    %1307 = vmatpush1.msra.mxu0 0.0
    %1308 = vmatprep.subr.mxu0 0.0
    %1309 = vmatpush1.msra.mxu0 0.0
    %1310 = vmatprep.subr.mxu0 0.0
    %1311 = vmatpush1.msra.mxu0 0.0
    %1312 = vmatprep.subr.mxu0 0.0
    %1313 = vmatpush1.msra.mxu0 0.0
    %1314 = vmatprep.subr.mxu0 0.0
    %1315 = vmatpush1.msra.mxu0 0.0
    %1316 = vmatprep.mubr.f32.mxu0 0.0
    %1317 = vmatmul.mubr.f32.gmra.mrb[0].mxu0 %v1242
    %v1318 = vpop.f32.mrb[0].mxu0
    %v1319 = vadd.f32 0.0, %v1318
    %v1320 = vpop.f32.mrb[0].mxu0
    %v1321 = vadd.f32 0.0, %v1320
    %1322 = vdwg.mxu0
    %1323 = vmatprep.subr.mxu0 %v1250
    %1324 = vmatpush1.msra.mxu0 %v1248
    %1325 = vmatprep.subr.mxu0 0.0
    %1326 = vmatpush1.msra.mxu0 0.0
    %1327 = vmatprep.subr.mxu0 0.0
    %1328 = vmatpush1.msra.mxu0 0.0
    %1329 = vmatprep.subr.mxu0 0.0
    %1330 = vmatpush1.msra.mxu0 0.0
    %1331 = vmatprep.subr.mxu0 0.0
    %1332 = vmatpush1.msra.mxu0 0.0
    %1333 = vmatprep.subr.mxu0 0.0
    %1334 = vmatpush1.msra.mxu0 0.0
    %1335 = vmatprep.subr.mxu0 0.0
    %1336 = vmatpush1.msra.mxu0 0.0
    %1337 = vmatprep.subr.mxu0 0.0
    %1338 = vmatpush1.msra.mxu0 0.0
    %1339 = vmatprep.subr.mxu0 0.0
    %1340 = vmatpush1.msra.mxu0 0.0
    %1341 = vmatprep.subr.mxu0 0.0
    %1342 = vmatpush1.msra.mxu0 0.0
    %1343 = vmatprep.subr.mxu0 0.0
    %1344 = vmatpush1.msra.mxu0 0.0
    %1345 = vmatprep.subr.mxu0 0.0
    %1346 = vmatpush1.msra.mxu0 0.0
    %1347 = vmatprep.subr.mxu0 0.0
    %1348 = vmatpush1.msra.mxu0 0.0
    %1349 = vmatprep.subr.mxu0 0.0
    %1350 = vmatpush1.msra.mxu0 0.0
    %1351 = vmatprep.subr.mxu0 0.0
    %1352 = vmatpush1.msra.mxu0 0.0
    %1353 = vmatprep.subr.mxu0 0.0
    %1354 = vmatpush1.msra.mxu0 0.0
    %1355 = vmatprep.subr.mxu0 0.0
    %1356 = vmatpush1.msra.mxu0 0.0
    %1357 = vmatprep.subr.mxu0 0.0
    %1358 = vmatpush1.msra.mxu0 0.0
    %1359 = vmatprep.subr.mxu0 0.0
    %1360 = vmatpush1.msra.mxu0 0.0
    %1361 = vmatprep.subr.mxu0 0.0
    %1362 = vmatpush1.msra.mxu0 0.0
    %1363 = vmatprep.subr.mxu0 0.0
    %1364 = vmatpush1.msra.mxu0 0.0
    %1365 = vmatprep.subr.mxu0 0.0
    %1366 = vmatpush1.msra.mxu0 0.0
    %1367 = vmatprep.subr.mxu0 0.0
    %1368 = vmatpush1.msra.mxu0 0.0
    %1369 = vmatprep.subr.mxu0 0.0
    %1370 = vmatpush1.msra.mxu0 0.0
    %1371 = vmatprep.subr.mxu0 0.0
    %1372 = vmatpush1.msra.mxu0 0.0
    %1373 = vmatprep.subr.mxu0 0.0
    %1374 = vmatpush1.msra.mxu0 0.0
    %1375 = vmatprep.subr.mxu0 0.0
    %1376 = vmatpush1.msra.mxu0 0.0
    %1377 = vmatprep.subr.mxu0 0.0
    %1378 = vmatpush1.msra.mxu0 0.0
    %1379 = vmatprep.subr.mxu0 0.0
    %1380 = vmatpush1.msra.mxu0 0.0
    %1381 = vmatprep.subr.mxu0 0.0
    %1382 = vmatpush1.msra.mxu0 0.0
    %1383 = vmatprep.subr.mxu0 0.0
    %1384 = vmatpush1.msra.mxu0 0.0
    %1385 = vmatprep.subr.mxu0 0.0
    %1386 = vmatpush1.msra.mxu0 0.0
    %1387 = vmatprep.mubr.f32.mxu0 0.0
    %1388 = vmatmul.mubr.f32.gmra.mrb[0].mxu0 %v1242
    %v1389 = vpop.f32.mrb[0].mxu0
    %v1390 = vadd.f32 0.0, %v1389
    %v1391 = vpop.f32.mrb[0].mxu0
    %v1392 = vadd.f32 0.0, %v1391
    %1393 = vdwg.mxu0
    %v1394 = vadd.f32 %v1221, %v1319
    %v1395 = vadd.f32 %v1222, %v1321
    %v1396 = vadd.f32 %v1223, %v1390
    %v1397 = vadd.f32 %v1224, %v1392
    %1398 = vrot.lane.b32.xlu0 %v30, 104
    %v1399 = vpop.permute.xlu0 %1398
    %1400 = vrot.lane.b32.xlu0 %v27, 94
    %v1401 = vpop.permute.xlu0 %1400
    %1402 = vrot.lane.b32.xlu0 %v37, 94
    %v1403 = vpop.permute.xlu0 %1402
    %1404 = vrot.lane.b32.xlu0 %v28, 94
    %v1405 = vpop.permute.xlu0 %1404
    %1406 = vrot.lane.b32.xlu0 %v38, 94
    %v1407 = vpop.permute.xlu0 %1406
    %1408 = vrot.lane.b32.xlu0 %v29, 94
    %v1409 = vpop.permute.xlu0 %1408
    %vm1410 = vcmask 769024
    %v1411 = vsel %vm1410, %v1401, %v1403
    %v1412 = vsel %vm1410, %v1403, %v1405
    %v1413 = vsel %vm1410, %v1405, %v1407
    %v1414 = vsel %vm1410, %v1407, %v1409
    %v1415 = vsel %vm54, %v1399, 0
    %v1417 = vsel %vm57, %v1411, 0
    %v1419 = vsel %vm57, %v1412, 0
    %v1421 = vsel %vm57, %v1413, 0
    %v1423 = vsel %vm57, %v1414, 0
    %1425 = vmatprep.subr.mxu0 %v1419
    %1426 = vmatpush1.msra.mxu0 %v1417
    %1427 = vmatprep.subr.mxu0 0.0
    %1428 = vmatpush1.msra.mxu0 0.0
    %1429 = vmatprep.subr.mxu0 0.0
    %1430 = vmatpush1.msra.mxu0 0.0
    %1431 = vmatprep.subr.mxu0 0.0
    %1432 = vmatpush1.msra.mxu0 0.0
    %1433 = vmatprep.subr.mxu0 0.0
    %1434 = vmatpush1.msra.mxu0 0.0
    %1435 = vmatprep.subr.mxu0 0.0
    %1436 = vmatpush1.msra.mxu0 0.0
    %1437 = vmatprep.subr.mxu0 0.0
    %1438 = vmatpush1.msra.mxu0 0.0
    %1439 = vmatprep.subr.mxu0 0.0
    %1440 = vmatpush1.msra.mxu0 0.0
    %1441 = vmatprep.subr.mxu0 0.0
    %1442 = vmatpush1.msra.mxu0 0.0
    %1443 = vmatprep.subr.mxu0 0.0
    %1444 = vmatpush1.msra.mxu0 0.0
    %1445 = vmatprep.subr.mxu0 0.0
    %1446 = vmatpush1.msra.mxu0 0.0
    %1447 = vmatprep.subr.mxu0 0.0
    %1448 = vmatpush1.msra.mxu0 0.0
    %1449 = vmatprep.subr.mxu0 0.0
    %1450 = vmatpush1.msra.mxu0 0.0
    %1451 = vmatprep.subr.mxu0 0.0
    %1452 = vmatpush1.msra.mxu0 0.0
    %1453 = vmatprep.subr.mxu0 0.0
    %1454 = vmatpush1.msra.mxu0 0.0
    %1455 = vmatprep.subr.mxu0 0.0
    %1456 = vmatpush1.msra.mxu0 0.0
    %1457 = vmatprep.subr.mxu0 0.0
    %1458 = vmatpush1.msra.mxu0 0.0
    %1459 = vmatprep.subr.mxu0 0.0
    %1460 = vmatpush1.msra.mxu0 0.0
    %1461 = vmatprep.subr.mxu0 0.0
    %1462 = vmatpush1.msra.mxu0 0.0
    %1463 = vmatprep.subr.mxu0 0.0
    %1464 = vmatpush1.msra.mxu0 0.0
    %1465 = vmatprep.subr.mxu0 0.0
    %1466 = vmatpush1.msra.mxu0 0.0
    %1467 = vmatprep.subr.mxu0 0.0
    %1468 = vmatpush1.msra.mxu0 0.0
    %1469 = vmatprep.subr.mxu0 0.0
    %1470 = vmatpush1.msra.mxu0 0.0
    %1471 = vmatprep.subr.mxu0 0.0
    %1472 = vmatpush1.msra.mxu0 0.0
    %1473 = vmatprep.subr.mxu0 0.0
    %1474 = vmatpush1.msra.mxu0 0.0
    %1475 = vmatprep.subr.mxu0 0.0
    %1476 = vmatpush1.msra.mxu0 0.0
    %1477 = vmatprep.subr.mxu0 0.0
    %1478 = vmatpush1.msra.mxu0 0.0
    %1479 = vmatprep.subr.mxu0 0.0
    %1480 = vmatpush1.msra.mxu0 0.0
    %1481 = vmatprep.subr.mxu0 0.0
    %1482 = vmatpush1.msra.mxu0 0.0
    %1483 = vmatprep.subr.mxu0 0.0
    %1484 = vmatpush1.msra.mxu0 0.0
    %1485 = vmatprep.subr.mxu0 0.0
    %1486 = vmatpush1.msra.mxu0 0.0
    %1487 = vmatprep.subr.mxu0 0.0
    %1488 = vmatpush1.msra.mxu0 0.0
    %1489 = vmatprep.mubr.f32.mxu0 0.0
    %1490 = vmatmul.mubr.f32.gmra.mrb[0].mxu0 %v1415
    %v1491 = vpop.f32.mrb[0].mxu0
    %v1492 = vadd.f32 0.0, %v1491
    %v1493 = vpop.f32.mrb[0].mxu0
    %v1494 = vadd.f32 0.0, %v1493
    %1495 = vdwg.mxu0
    %1496 = vmatprep.subr.mxu0 %v1423
    %1497 = vmatpush1.msra.mxu0 %v1421
    %1498 = vmatprep.subr.mxu0 0.0
    %1499 = vmatpush1.msra.mxu0 0.0
    %1500 = vmatprep.subr.mxu0 0.0
    %1501 = vmatpush1.msra.mxu0 0.0
    %1502 = vmatprep.subr.mxu0 0.0
    %1503 = vmatpush1.msra.mxu0 0.0
    %1504 = vmatprep.subr.mxu0 0.0
    %1505 = vmatpush1.msra.mxu0 0.0
    %1506 = vmatprep.subr.mxu0 0.0
    %1507 = vmatpush1.msra.mxu0 0.0
    %1508 = vmatprep.subr.mxu0 0.0
    %1509 = vmatpush1.msra.mxu0 0.0
    %1510 = vmatprep.subr.mxu0 0.0
    %1511 = vmatpush1.msra.mxu0 0.0
    %1512 = vmatprep.subr.mxu0 0.0
    %1513 = vmatpush1.msra.mxu0 0.0
    %1514 = vmatprep.subr.mxu0 0.0
    %1515 = vmatpush1.msra.mxu0 0.0
    %1516 = vmatprep.subr.mxu0 0.0
    %1517 = vmatpush1.msra.mxu0 0.0
    %1518 = vmatprep.subr.mxu0 0.0
    %1519 = vmatpush1.msra.mxu0 0.0
    %1520 = vmatprep.subr.mxu0 0.0
    %1521 = vmatpush1.msra.mxu0 0.0
    %1522 = vmatprep.subr.mxu0 0.0
    %1523 = vmatpush1.msra.mxu0 0.0
    %1524 = vmatprep.subr.mxu0 0.0
    %1525 = vmatpush1.msra.mxu0 0.0
    %1526 = vmatprep.subr.mxu0 0.0
    %1527 = vmatpush1.msra.mxu0 0.0
    %1528 = vmatprep.subr.mxu0 0.0
    %1529 = vmatpush1.msra.mxu0 0.0
    %1530 = vmatprep.subr.mxu0 0.0
    %1531 = vmatpush1.msra.mxu0 0.0
    %1532 = vmatprep.subr.mxu0 0.0
    %1533 = vmatpush1.msra.mxu0 0.0
    %1534 = vmatprep.subr.mxu0 0.0
    %1535 = vmatpush1.msra.mxu0 0.0
    %1536 = vmatprep.subr.mxu0 0.0
    %1537 = vmatpush1.msra.mxu0 0.0
    %1538 = vmatprep.subr.mxu0 0.0
    %1539 = vmatpush1.msra.mxu0 0.0
    %1540 = vmatprep.subr.mxu0 0.0
    %1541 = vmatpush1.msra.mxu0 0.0
    %1542 = vmatprep.subr.mxu0 0.0
    %1543 = vmatpush1.msra.mxu0 0.0
    %1544 = vmatprep.subr.mxu0 0.0
    %1545 = vmatpush1.msra.mxu0 0.0
    %1546 = vmatprep.subr.mxu0 0.0
    %1547 = vmatpush1.msra.mxu0 0.0
    %1548 = vmatprep.subr.mxu0 0.0
    %1549 = vmatpush1.msra.mxu0 0.0
    %1550 = vmatprep.subr.mxu0 0.0
    %1551 = vmatpush1.msra.mxu0 0.0
    %1552 = vmatprep.subr.mxu0 0.0
    %1553 = vmatpush1.msra.mxu0 0.0
    %1554 = vmatprep.subr.mxu0 0.0
    %1555 = vmatpush1.msra.mxu0 0.0
    %1556 = vmatprep.subr.mxu0 0.0
    %1557 = vmatpush1.msra.mxu0 0.0
    %1558 = vmatprep.subr.mxu0 0.0
    %1559 = vmatpush1.msra.mxu0 0.0
    %1560 = vmatprep.mubr.f32.mxu0 0.0
    %1561 = vmatmul.mubr.f32.gmra.mrb[0].mxu0 %v1415
    %v1562 = vpop.f32.mrb[0].mxu0
    %v1563 = vadd.f32 0.0, %v1562
    %v1564 = vpop.f32.mrb[0].mxu0
    %v1565 = vadd.f32 0.0, %v1564
    %1566 = vdwg.mxu0
    %v1567 = vadd.f32 %v1394, %v1492
    %v1568 = vadd.f32 %v1395, %v1494
    %v1569 = vadd.f32 %v1396, %v1563
    %v1570 = vadd.f32 %v1397, %v1565
    %v1571 = vld [vmem:[%s2] sm:$0x3f]
    %1573 = vset.pattern.permute.xlu0 0
    %1574 = vperm.xlu0 %1573, %v1571
    %v1575 = vpop.permute.xlu0 %1574
    %v1577 = vadd.f32 %v1567, %v1575
    %v1578 = vadd.f32 %v1568, %v1575
    %v1579 = vadd.f32 %v1569, %v1575
    %v1580 = vadd.f32 %v1570, %v1575
    %1581 = vst [vmem:[#allocation5] sm:$0x3f] %v1577
    %1582 = vst [vmem:[#allocation5 + $0x8] sm:$0x3f] %v1578
    %1583 = vst [vmem:[#allocation5 + $0x10] sm:$0x3f] %v1579
    %1584 = vst [vmem:[#allocation5 + $0x18] sm:$0x3f] %v1580
    // Predicated region
    $region18: #{tpu_custom_call.1} parent=1 // pred_check
      _
    $region19: #{tpu_custom_call.1} parent=1 // pred_check_branch
      %1586 = sbr.rel (0) target = $region21
    $region20: #{tpu_custom_call.1} parent=1 // pred_region
      %s1588 = ssub.s32 512, 512
      %1589 = vsyncadd [#allocation4], %s1588
      %s1591 = sshll.u32 [#allocation5], 4
      %s1592 = int_to_ptr.vmem [resolvable:$true] %s1591
      %1594 = dma.vmem_to_hbm [thread:$0]  %s1592, 512, %s3, [#allocation4]
    $region21: #{tpu_custom_call.1} parent=1 // pred_fallthru
      _
    // Predicated region
    $region22: #{tpu_custom_call.1} parent=1 // pred_check
      _
    $region23: #{tpu_custom_call.1} parent=1 // pred_check_branch
      %1596 = sbr.rel (0) target = $region25
    $region24: #{tpu_custom_call.1} parent=1 // pred_region
      %1597 = dma.done [#allocation4], 512
    $region25: #{tpu_custom_call.1} parent=1 // pred_fallthru
      _
    %1598 = vsyncpa [#allocation3], 1
    %1599 = vsyncpa [#allocation4], 1

</llo_original>
